<compile_context>
chip_gen: v5e
topology: v5e:2x2
jax: 0.10.0
libtpu: 0.0.40
codegen_flags: <defaults>
</compile_context>

<pallas_src>
import functools

import jax
import jax.numpy as jnp
from jax.experimental import pallas as pl
from jax.experimental.pallas import tpu as pltpu


def _basic_conv_kernel(xb_ref, w_ref, b_ref, o_ref, *, K, TH, Wo, apply_gelu):
    """One (batch, row-block) tile: conv (stride 1, pre-padded rows) + bias + GELU.

    xb_ref: (1, TH + 2p, Wp, Cin)   input row block with halo (compute dtype)
    w_ref : (K*K, Cin, Coutp)       weights, Cout zero-padded to Coutp % 128 == 0
    b_ref : (1, Coutp)              f32 bias (zero-padded)
    o_ref : (1, TH, Wo, Coutp)      output tile (lane-dense last dim)
    """
    cin = xb_ref.shape[-1]
    coutp = o_ref.shape[-1]
    xb = xb_ref[0]                                   # (TH+2p, Wp, Cin)

    # f32 accumulator, lane-dense (last dim is a multiple of 128).
    acc = jnp.zeros((TH * Wo, coutp), jnp.float32)

    # Unrolled static loop over the K*K taps; every tap is a
    # (TH*Wo, Cin) x (Cin, Coutp) MXU matmul accumulated in f32.
    for kh in range(K):
        for kw in range(K):
            patch = xb[kh:kh + TH, kw:kw + Wo, :]    # (TH, Wo, Cin), stride 1
            acc = acc + jnp.dot(patch.reshape(TH * Wo, cin),
                                w_ref[kh * K + kw],
                                preferred_element_type=jnp.float32)

    acc = acc + b_ref[...]                           # broadcast (1, Coutp), f32
    if apply_gelu:
        # Exact GELU: 0.5 * x * (1 + erf(x / sqrt(2)))  (matches nn.GELU()).
        acc = 0.5 * acc * (1.0 + jax.lax.erf(acc * 0.7071067811865476))

    # Lane-dense store: last dim stays Coutp (multiple of 128) -> unmasked vst.
    o_ref[0] = acc.reshape(TH, Wo, coutp).astype(o_ref.dtype)


def _pick_row_tile(Ho, Wo, Cin, Coutp, pad, budget_bytes=4 * 1024 * 1024):
    """Pick a multiple-of-8 row tile dividing Ho that fits the VMEM budget and,
    when possible, still leaves >= 2 row blocks per image for pipelining."""
    if Ho % 8 != 0:
        return Ho                     # tiny / odd heights: one block per image

    def step_bytes(th):
        inp = (th + 2 * pad) * (Wo + 2 * pad) * Cin * 2   # bf16 input block
        out = th * Wo * Coutp * 4                         # f32 output block
        acc = th * Wo * Coutp * 4                         # f32 accumulator
        return 2 * inp + 2 * out + acc                    # double-buffered I/O

    cands = [t for t in range(8, Ho + 1, 8)
             if Ho % t == 0 and step_bytes(t) <= budget_bytes]
    if not cands:
        return 8
    multi = [t for t in cands if Ho // t >= 2]
    return max(multi) if multi else max(cands)


def basic_conv(x_nchw, w_oihw, bias, *, stride=1, relu=True,
               compute_dtype=jnp.bfloat16):
    """BasicConv forward. x_nchw: (N, Cin, H, W); w_oihw: (Cout, Cin, K, K)."""
    assert stride == 1, "only stride=1 implemented in-kernel"
    N, Cin, H, W = x_nchw.shape
    Cout, Cin_w, K, K2 = w_oihw.shape
    assert Cin_w == Cin and K == K2
    assert K % 2 == 1, "padding=k//2 'same' conv requires odd kernel_size"
    p = K // 2
    Ho, Wo = H, W                     # stride 1 + padding k//2 -> same spatial
    Wp = W + 2 * p

    # Lane-dense output channel count (multiple of 128); the padded channels
    # have zero weights / zero bias and are sliced off after the kernel.
    Coutp = ((Cout + 127) // 128) * 128

    TH = _pick_row_tile(Ho, Wo, Cin, Coutp, p)
    n_blocks = Ho // TH

    # --- wrapper-side layout prep (NCHW -> NHWC, pad, row blocks with halo) ---
    x_nhwc = jnp.transpose(x_nchw, (0, 2, 3, 1))
    xp = jnp.pad(x_nhwc, ((0, 0), (p, p), (p, p), (0, 0)))
    xb = jnp.stack(
        [xp[:, i * TH:i * TH + TH + 2 * p] for i in range(n_blocks)], axis=1)
    xb = xb.reshape(N * n_blocks, TH + 2 * p, Wp, Cin).astype(compute_dtype)

    w_hwio = jnp.transpose(w_oihw, (2, 3, 1, 0)).reshape(K * K, Cin, Cout)
    w_pad = jnp.pad(w_hwio,
                    ((0, 0), (0, 0), (0, Coutp - Cout))).astype(compute_dtype)
    b_pad = jnp.pad(bias, (0, Coutp - Cout)).reshape(1, Coutp).astype(jnp.float32)

    kern = functools.partial(_basic_conv_kernel, K=K, TH=TH, Wo=Wo,
                             apply_gelu=relu)

    out_nhwc = pl.pallas_call(
        kern,
        out_shape=jax.ShapeDtypeStruct((N, Ho, Wo, Coutp), x_nchw.dtype),
        grid_spec=pltpu.PrefetchScalarGridSpec(
            num_scalar_prefetch=0,
            grid=(N, n_blocks),
            in_specs=[
                # One input row block (with halo) per (n, i) grid step.
                pl.BlockSpec((1, TH + 2 * p, Wp, Cin),
                             lambda n, i: (n * n_blocks + i, 0, 0, 0)),
                # Weights / bias: constant index map -> resident in VMEM.
                pl.BlockSpec((K * K, Cin, Coutp), lambda n, i: (0, 0, 0)),
                pl.BlockSpec((1, Coutp), lambda n, i: (0, 0)),
            ],
            out_specs=pl.BlockSpec((1, TH, Wo, Coutp),
                                   lambda n, i: (n, i, 0, 0)),
        ),
        compiler_params=pltpu.CompilerParams(
            # Both axes are independent -> shard across v7x's 2 TensorCores.
            dimension_semantics=("parallel", "parallel"),
            # Explicit limit with headroom below v7x's 64 MiB physical VMEM.
            vmem_limit_bytes=48 * 1024 * 1024,
        ),
    )(xb, w_pad, b_pad)

    out_nhwc = out_nhwc[..., :Cout]                   # drop padded channels
    return jnp.transpose(out_nhwc, (0, 3, 1, 2))      # back to NCHW


def _reference(x_nchw, w_oihw, bias, relu=True, compute_dtype=jnp.bfloat16):
    """Pure-JAX reference: same bf16-operand / f32-accumulate conv + bias + GELU."""
    K = w_oihw.shape[-1]
    p = K // 2
    out = jax.lax.conv_general_dilated(
        x_nchw.astype(compute_dtype), w_oihw.astype(compute_dtype),
        window_strides=(1, 1), padding=[(p, p), (p, p)],
        dimension_numbers=("NCHW", "OIHW", "NCHW"),
        preferred_element_type=jnp.float32)
    out = out + bias.reshape(1, -1, 1, 1).astype(jnp.float32)
    if relu:
        out = 0.5 * out * (1.0 + jax.lax.erf(out * 0.7071067811865476))
    return out.astype(x_nchw.dtype)


if __name__ == "__main__":
    key = jax.random.PRNGKey(0)
    kx, kw, kb = jax.random.split(key, 3)

    N, Cin, H, W = 2, 4, 16, 16
    Cout, K = 8, 3

    x = jax.random.normal(kx, (N, Cin, H, W), dtype=jnp.float32)
    # Deterministic "Kaiming-ish" init for the Conv2d parameters.
    fan_in = Cin * K * K
    w = jax.random.normal(kw, (Cout, Cin, K, K), dtype=jnp.float32) / jnp.sqrt(fan_in)
    b = jax.random.normal(kb, (Cout,), dtype=jnp.float32) * 0.1

    out = basic_conv(x, w, b, stride=1, relu=True)
    out = jax.block_until_ready(out)

    ref = _reference(x, w, b, relu=True)
    assert out.shape == (N, Cout, H, W)
    assert jnp.allclose(out, ref, atol=1e-3, rtol=1e-3), "mismatch vs reference"

    print("KERNEL_OK")
</pallas_src>

<mosaic_0001>
module attributes {stable_mosaic.version = 11 : i64} {
  func.func @_basic_conv_kernel(%arg0: i32, %arg1: i32, %arg2: memref<1x10x18x4xbf16, #tpu.memory_space<vmem>>, %arg3: memref<9x4x128xbf16, #tpu.memory_space<vmem>>, %arg4: memref<1x128xf32, #tpu.memory_space<vmem>>, %arg5: memref<1x8x16x128xf32, #tpu.memory_space<vmem>>) attributes {dimension_semantics = [#tpu.dimension_semantics<parallel>, #tpu.dimension_semantics<parallel>], iteration_bounds = array<i64: 2, 2>, scalar_prefetch = 0 : i64, scratch_operands = 0 : i64, tpu.core_type = #tpu.core_type<tc>, window_params = [{transform_indices = @transform_0, window_bounds = array<i64: 1, 10, 18, 4>}, {pipeline_mode = #tpu.pipeline_mode<synchronous>, transform_indices = @transform_1, window_bounds = array<i64: 9, 4, 128>}, {pipeline_mode = #tpu.pipeline_mode<synchronous>, transform_indices = @transform_2, window_bounds = array<i64: 1, 128>}, {transform_indices = @transform_3, window_bounds = array<i64: 1, 8, 16, 128>}]} {
    %c0 = arith.constant 0 : index
    %c0_0 = arith.constant 0 : index
    %c0_1 = arith.constant 0 : index
    %c0_2 = arith.constant 0 : index
    %0 = vector.load %arg2[%c0, %c0_0, %c0_1, %c0_2] : memref<1x10x18x4xbf16, #tpu.memory_space<vmem>>, vector<1x10x18x4xbf16>
    %1 = vector.shape_cast %0 : vector<1x10x18x4xbf16> to vector<10x18x4xbf16>
    %cst = arith.constant 0.000000e+00 : f32
    %2 = vector.broadcast %cst : f32 to vector<128x128xf32>
    %3 = vector.extract_strided_slice %1 {offsets = [0, 0, 0], sizes = [8, 16, 4], strides = [1, 1, 1]} : vector<10x18x4xbf16> to vector<8x16x4xbf16>
    %4 = vector.shape_cast %3 : vector<8x16x4xbf16> to vector<128x4xbf16>
    %c0_3 = arith.constant 0 : index
    %c0_4 = arith.constant 0 : index
    %c0_5 = arith.constant 0 : index
    %5 = vector.load %arg3[%c0_3, %c0_4, %c0_5] : memref<9x4x128xbf16, #tpu.memory_space<vmem>>, vector<1x4x128xbf16>
    %6 = vector.shape_cast %5 : vector<1x4x128xbf16> to vector<4x128xbf16>
    %cst_6 = arith.constant dense<0.000000e+00> : vector<128x128xf32>
    %7 = tpu.matmul %4, %6, %cst_6 {dimension_numbers = #tpu.dot_dimension_numbers<[1], [0], [0], [1], [0, 0, 1, 1], [], []>} : vector<128x4xbf16>, vector<4x128xbf16>, vector<128x128xf32> -> vector<128x128xf32>
    %8 = arith.addf %2, %7 : vector<128x128xf32>
    %9 = vector.extract_strided_slice %1 {offsets = [0, 1, 0], sizes = [8, 16, 4], strides = [1, 1, 1]} : vector<10x18x4xbf16> to vector<8x16x4xbf16>
    %10 = vector.shape_cast %9 : vector<8x16x4xbf16> to vector<128x4xbf16>
    %c1 = arith.constant 1 : index
    %c0_7 = arith.constant 0 : index
    %c0_8 = arith.constant 0 : index
    %11 = vector.load %arg3[%c1, %c0_7, %c0_8] : memref<9x4x128xbf16, #tpu.memory_space<vmem>>, vector<1x4x128xbf16>
    %12 = vector.shape_cast %11 : vector<1x4x128xbf16> to vector<4x128xbf16>
    %cst_9 = arith.constant dense<0.000000e+00> : vector<128x128xf32>
    %13 = tpu.matmul %10, %12, %cst_9 {dimension_numbers = #tpu.dot_dimension_numbers<[1], [0], [0], [1], [0, 0, 1, 1], [], []>} : vector<128x4xbf16>, vector<4x128xbf16>, vector<128x128xf32> -> vector<128x128xf32>
    %14 = arith.addf %8, %13 : vector<128x128xf32>
    %15 = vector.extract_strided_slice %1 {offsets = [0, 2, 0], sizes = [8, 16, 4], strides = [1, 1, 1]} : vector<10x18x4xbf16> to vector<8x16x4xbf16>
    %16 = vector.shape_cast %15 : vector<8x16x4xbf16> to vector<128x4xbf16>
    %c2 = arith.constant 2 : index
    %c0_10 = arith.constant 0 : index
    %c0_11 = arith.constant 0 : index
    %17 = vector.load %arg3[%c2, %c0_10, %c0_11] : memref<9x4x128xbf16, #tpu.memory_space<vmem>>, vector<1x4x128xbf16>
    %18 = vector.shape_cast %17 : vector<1x4x128xbf16> to vector<4x128xbf16>
    %cst_12 = arith.constant dense<0.000000e+00> : vector<128x128xf32>
    %19 = tpu.matmul %16, %18, %cst_12 {dimension_numbers = #tpu.dot_dimension_numbers<[1], [0], [0], [1], [0, 0, 1, 1], [], []>} : vector<128x4xbf16>, vector<4x128xbf16>, vector<128x128xf32> -> vector<128x128xf32>
    %20 = arith.addf %14, %19 : vector<128x128xf32>
    %21 = vector.extract_strided_slice %1 {offsets = [1, 0, 0], sizes = [8, 16, 4], strides = [1, 1, 1]} : vector<10x18x4xbf16> to vector<8x16x4xbf16>
    %22 = vector.shape_cast %21 : vector<8x16x4xbf16> to vector<128x4xbf16>
    %c3 = arith.constant 3 : index
    %c0_13 = arith.constant 0 : index
    %c0_14 = arith.constant 0 : index
    %23 = vector.load %arg3[%c3, %c0_13, %c0_14] : memref<9x4x128xbf16, #tpu.memory_space<vmem>>, vector<1x4x128xbf16>
    %24 = vector.shape_cast %23 : vector<1x4x128xbf16> to vector<4x128xbf16>
    %cst_15 = arith.constant dense<0.000000e+00> : vector<128x128xf32>
    %25 = tpu.matmul %22, %24, %cst_15 {dimension_numbers = #tpu.dot_dimension_numbers<[1], [0], [0], [1], [0, 0, 1, 1], [], []>} : vector<128x4xbf16>, vector<4x128xbf16>, vector<128x128xf32> -> vector<128x128xf32>
    %26 = arith.addf %20, %25 : vector<128x128xf32>
    %27 = vector.extract_strided_slice %1 {offsets = [1, 1, 0], sizes = [8, 16, 4], strides = [1, 1, 1]} : vector<10x18x4xbf16> to vector<8x16x4xbf16>
    %28 = vector.shape_cast %27 : vector<8x16x4xbf16> to vector<128x4xbf16>
    %c4 = arith.constant 4 : index
    %c0_16 = arith.constant 0 : index
    %c0_17 = arith.constant 0 : index
    %29 = vector.load %arg3[%c4, %c0_16, %c0_17] : memref<9x4x128xbf16, #tpu.memory_space<vmem>>, vector<1x4x128xbf16>
    %30 = vector.shape_cast %29 : vector<1x4x128xbf16> to vector<4x128xbf16>
    %cst_18 = arith.constant dense<0.000000e+00> : vector<128x128xf32>
    %31 = tpu.matmul %28, %30, %cst_18 {dimension_numbers = #tpu.dot_dimension_numbers<[1], [0], [0], [1], [0, 0, 1, 1], [], []>} : vector<128x4xbf16>, vector<4x128xbf16>, vector<128x128xf32> -> vector<128x128xf32>
    %32 = arith.addf %26, %31 : vector<128x128xf32>
    %33 = vector.extract_strided_slice %1 {offsets = [1, 2, 0], sizes = [8, 16, 4], strides = [1, 1, 1]} : vector<10x18x4xbf16> to vector<8x16x4xbf16>
    %34 = vector.shape_cast %33 : vector<8x16x4xbf16> to vector<128x4xbf16>
    %c5 = arith.constant 5 : index
    %c0_19 = arith.constant 0 : index
    %c0_20 = arith.constant 0 : index
    %35 = vector.load %arg3[%c5, %c0_19, %c0_20] : memref<9x4x128xbf16, #tpu.memory_space<vmem>>, vector<1x4x128xbf16>
    %36 = vector.shape_cast %35 : vector<1x4x128xbf16> to vector<4x128xbf16>
    %cst_21 = arith.constant dense<0.000000e+00> : vector<128x128xf32>
    %37 = tpu.matmul %34, %36, %cst_21 {dimension_numbers = #tpu.dot_dimension_numbers<[1], [0], [0], [1], [0, 0, 1, 1], [], []>} : vector<128x4xbf16>, vector<4x128xbf16>, vector<128x128xf32> -> vector<128x128xf32>
    %38 = arith.addf %32, %37 : vector<128x128xf32>
    %39 = vector.extract_strided_slice %1 {offsets = [2, 0, 0], sizes = [8, 16, 4], strides = [1, 1, 1]} : vector<10x18x4xbf16> to vector<8x16x4xbf16>
    %40 = vector.shape_cast %39 : vector<8x16x4xbf16> to vector<128x4xbf16>
    %c6 = arith.constant 6 : index
    %c0_22 = arith.constant 0 : index
    %c0_23 = arith.constant 0 : index
    %41 = vector.load %arg3[%c6, %c0_22, %c0_23] : memref<9x4x128xbf16, #tpu.memory_space<vmem>>, vector<1x4x128xbf16>
    %42 = vector.shape_cast %41 : vector<1x4x128xbf16> to vector<4x128xbf16>
    %cst_24 = arith.constant dense<0.000000e+00> : vector<128x128xf32>
    %43 = tpu.matmul %40, %42, %cst_24 {dimension_numbers = #tpu.dot_dimension_numbers<[1], [0], [0], [1], [0, 0, 1, 1], [], []>} : vector<128x4xbf16>, vector<4x128xbf16>, vector<128x128xf32> -> vector<128x128xf32>
    %44 = arith.addf %38, %43 : vector<128x128xf32>
    %45 = vector.extract_strided_slice %1 {offsets = [2, 1, 0], sizes = [8, 16, 4], strides = [1, 1, 1]} : vector<10x18x4xbf16> to vector<8x16x4xbf16>
    %46 = vector.shape_cast %45 : vector<8x16x4xbf16> to vector<128x4xbf16>
    %c7 = arith.constant 7 : index
    %c0_25 = arith.constant 0 : index
    %c0_26 = arith.constant 0 : index
    %47 = vector.load %arg3[%c7, %c0_25, %c0_26] : memref<9x4x128xbf16, #tpu.memory_space<vmem>>, vector<1x4x128xbf16>
    %48 = vector.shape_cast %47 : vector<1x4x128xbf16> to vector<4x128xbf16>
    %cst_27 = arith.constant dense<0.000000e+00> : vector<128x128xf32>
    %49 = tpu.matmul %46, %48, %cst_27 {dimension_numbers = #tpu.dot_dimension_numbers<[1], [0], [0], [1], [0, 0, 1, 1], [], []>} : vector<128x4xbf16>, vector<4x128xbf16>, vector<128x128xf32> -> vector<128x128xf32>
    %50 = arith.addf %44, %49 : vector<128x128xf32>
    %51 = vector.extract_strided_slice %1 {offsets = [2, 2, 0], sizes = [8, 16, 4], strides = [1, 1, 1]} : vector<10x18x4xbf16> to vector<8x16x4xbf16>
    %52 = vector.shape_cast %51 : vector<8x16x4xbf16> to vector<128x4xbf16>
    %c8 = arith.constant 8 : index
    %c0_28 = arith.constant 0 : index
    %c0_29 = arith.constant 0 : index
    %53 = vector.load %arg3[%c8, %c0_28, %c0_29] : memref<9x4x128xbf16, #tpu.memory_space<vmem>>, vector<1x4x128xbf16>
    %54 = vector.shape_cast %53 : vector<1x4x128xbf16> to vector<4x128xbf16>
    %cst_30 = arith.constant dense<0.000000e+00> : vector<128x128xf32>
    %55 = tpu.matmul %52, %54, %cst_30 {dimension_numbers = #tpu.dot_dimension_numbers<[1], [0], [0], [1], [0, 0, 1, 1], [], []>} : vector<128x4xbf16>, vector<4x128xbf16>, vector<128x128xf32> -> vector<128x128xf32>
    %56 = arith.addf %50, %55 : vector<128x128xf32>
    %c0_31 = arith.constant 0 : index
    %c0_32 = arith.constant 0 : index
    %57 = vector.load %arg4[%c0_31, %c0_32] : memref<1x128xf32, #tpu.memory_space<vmem>>, vector<1x128xf32>
    %58 = vector.broadcast %57 : vector<1x128xf32> to vector<128x128xf32>
    %59 = arith.addf %56, %58 : vector<128x128xf32>
    %cst_33 = arith.constant 5.000000e-01 : f32
    %60 = vector.broadcast %cst_33 : f32 to vector<128x128xf32>
    %61 = arith.mulf %60, %59 : vector<128x128xf32>
    %cst_34 = arith.constant 0.707106769 : f32
    %62 = vector.broadcast %cst_34 : f32 to vector<128x128xf32>
    %63 = arith.mulf %59, %62 : vector<128x128xf32>
    %64 = math.erf %63 : vector<128x128xf32>
    %cst_35 = arith.constant 1.000000e+00 : f32
    %65 = vector.broadcast %cst_35 : f32 to vector<128x128xf32>
    %66 = arith.addf %65, %64 : vector<128x128xf32>
    %67 = arith.mulf %61, %66 : vector<128x128xf32>
    %68 = vector.shape_cast %67 : vector<128x128xf32> to vector<8x16x128xf32>
    %c0_36 = arith.constant 0 : index
    %c0_37 = arith.constant 0 : index
    %c0_38 = arith.constant 0 : index
    %c0_39 = arith.constant 0 : index
    %69 = vector.load %arg5[%c0_36, %c0_37, %c0_38, %c0_39] : memref<1x8x16x128xf32, #tpu.memory_space<vmem>>, vector<1x8x16x128xf32>
    %70 = vector.shape_cast %69 : vector<1x8x16x128xf32> to vector<8x16x128xf32>
    %71 = vector.shape_cast %68 : vector<8x16x128xf32> to vector<1x8x16x128xf32>
    tpu.vector_store %arg5[%c0_36, %c0_37, %c0_38, %c0_39], %71 {strides = array<i32>} : memref<1x8x16x128xf32, #tpu.memory_space<vmem>>, vector<1x8x16x128xf32>,
    return
  }
  func.func @transform_0(%arg0: i32, %arg1: i32) -> (i32, i32, i32, i32) {
    %c2_i32 = arith.constant 2 : i32
    %0 = arith.muli %arg0, %c2_i32 : i32
    %1 = arith.addi %0, %arg1 : i32
    %c0_i32 = arith.constant 0 : i32
    %c0_i32_0 = arith.constant 0 : i32
    %c0_i32_1 = arith.constant 0 : i32
    %c0_i32_2 = arith.constant 0 : i32
    return %1, %c0_i32, %c0_i32_0, %c0_i32_1 : i32, i32, i32, i32
  }
  func.func @transform_1(%arg0: i32, %arg1: i32) -> (i32, i32, i32) {
    %c0_i32 = arith.constant 0 : i32
    %c0_i32_0 = arith.constant 0 : i32
    %c0_i32_1 = arith.constant 0 : i32
    %c0_i32_2 = arith.constant 0 : i32
    return %c0_i32, %c0_i32_0, %c0_i32_1 : i32, i32, i32
  }
  func.func @transform_2(%arg0: i32, %arg1: i32) -> (i32, i32) {
    %c0_i32 = arith.constant 0 : i32
    %c0_i32_0 = arith.constant 0 : i32
    %c0_i32_1 = arith.constant 0 : i32
    return %c0_i32, %c0_i32_0 : i32, i32
  }
  func.func @transform_3(%arg0: i32, %arg1: i32) -> (i32, i32, i32, i32) {
    %c0_i32 = arith.constant 0 : i32
    %c0_i32_0 = arith.constant 0 : i32
    %c0_i32_1 = arith.constant 0 : i32
    return %arg0, %arg1, %c0_i32, %c0_i32_0 : i32, i32, i32, i32
  }
}

</mosaic_0001>

<llo_original>
// kernel: tpu_custom_call.1
$region0: #{tpu_custom_call.1}
  #allocation0 [shape = 'u32[]', space=smem, size = 0x4, offset = 0x4, fixed_abs, tag = 'smem constant byte address 0x4 - core index']
  #allocation1 [shape = 'u32[72,128]{1,0:T(1,128)}', space=vmem, size = 0x9000, scoped, tag = 'internal scratch']
  %s0 = inlined_call_operand.vmem [shape: bf16[4,10,18,4], index: 0, kind: input, shape index: {}]
  %s1 = inlined_call_operand.vmem [shape: bf16[9,4,128], index: 1, kind: input, shape index: {}]
  %s2 = inlined_call_operand.vmem [shape: f32[1,128], index: 2, kind: input, shape index: {}]
  %s3 = inlined_call_operand.hbm [shape: f32[2,16,16,128], index: 3, kind: output, shape index: {}]
  %s4 = sld [smem:[#allocation0]]
  $region45: #{tpu_custom_call.1} parent=0
    _
  %s6 = ssub.s32 1, %s4
  %s7 = scalar_select 0, %s6, %s4
  $region1: #{tpu_custom_call.1} parent=0
    #allocation2 [shape = 'u8[131072]{0}', space=vmem, size = 0x20000, scoped, tag = 'output window, operand 0']
    #allocation3 [shape = 's32[2]{0}', space=sflag, size = 0x8, scoped, tag = 'scoped memory for tpu_custom_call.1']
    %8 = vsyncpa [#allocation3], 0
    %s9 = scalar_lea.sflag [#allocation3], 1
    %10 = vsyncpa %s9, 0
    loop: start=0, step=1, limit=6
    $region2: #{tpu_custom_call.1} parent=1 // loop_pre_header
      _
    $region3: #{tpu_custom_call.1} parent=1 // loop_header
      %s12 = sphi 0, %s16
      %p13 = scmp.ge.s32.totalorder %s12, 6
      %s19 = sphi 0, %s31
      %s20 = sphi 0, %s27
      %s21 = sphi 0, %s19
      %s22 = sphi 0, %s20
      %s23 = sphi 0, %s21
      %s24 = sphi 0, %s22
      %s38 = sphi 0, %s40
      %s41 = sphi 0, %s38
      %s42 = sphi 0, %s41
      %s58 = sphi 0, %s42
      %s62 = sphi 0, %s62
      %s64 = sphi 0, %s62
      %s65 = sphi 0, %s64
      %s79 = sphi 0, %s65
      %s83 = sphi 0, %s83
      %s85 = sphi 0, %s83
      %s86 = sphi 0, %s85
      %s100 = sphi 0, %s86
      %s108 = sphi 0, %s110
      %s111 = sphi 0, %s108
      %s112 = sphi 0, %s111
      %s128 = sphi 0, %s112
    $region4: #{tpu_custom_call.1} parent=1 // loop_header_branch
      %15 = sbr.rel (%p13) target = $region8
    $region5: #{tpu_custom_call.1} parent=1 // loop_body
      %s17 = ssub.s32 %s12, 1
      %s18 = ssub.s32 %s12, 2
      %s25 = sadd.s32 1, %s20
      %p26 = scmp.ge.s32.totalorder %s25, 2
      %s27 = scalar_select %p26, 0, %s25
      %s28 = sadd.s32 1, %s19
      %s29 = scalar_select %p26, %s28, %s19
      %p30 = scmp.ge.s32.totalorder %s29, 2
      %s31 = scalar_select %p30, 0, %s29
      %s32 = smul.u32 %s19, 2
      %s33 = sadd.s32 %s32, %s20
      %s34 = smul.u32 %s31, 2
      %s35 = sadd.s32 %s34, %s27
      %s36 = ssub.s32 %s33, %s35
      %p37 = scmp.eq.s32.totalorder %s36, 0
      %s39 = sadd.s32 %s38, 1
      %s40 = scalar_select %p37, %s38, %s39
      %p43 = pneg %p37
      %p44 = scmp.eq.s32.totalorder %s12, 3
      %p45 = por %p43, %p44
      %p46 = scmp.ne.s32.totalorder %s38, %s41
      %p47 = scmp.eq.s32.totalorder %s12, 0
      %p48 = por %p46, %p47
      %p49 = scmp.ne.s32.totalorder %s38, %s41
      %p50 = scmp.eq.s32.totalorder %s17, 3
      %p51 = por %p49, %p50
      %p52 = scmp.ne.s32.totalorder %s41, %s42
      %p53 = scmp.eq.s32.totalorder %s17, 0
      %p54 = por %p52, %p53
      %p55 = scmp.ne.s32.totalorder %s41, %s42
      %p56 = scmp.eq.s32.totalorder %s18, 3
      %p57 = por %p55, %p56
      %p59 = scmp.ne.s32.totalorder %s42, %s58
      %p60 = scmp.eq.s32.totalorder %s18, 0
      %p61 = por %p59, %p60
      %s63 = sadd.s32 %s62, 1
      %p66 = scmp.eq.s32.totalorder %s12, 3
      %p67 = scmp.ne.s32.totalorder %s62, %s64
      %p68 = scmp.eq.s32.totalorder %s12, 0
      %p69 = por %p67, %p68
      %p70 = scmp.ne.s32.totalorder %s62, %s64
      %p71 = scmp.eq.s32.totalorder %s17, 3
      %p72 = por %p70, %p71
      %p73 = scmp.ne.s32.totalorder %s64, %s65
      %p74 = scmp.eq.s32.totalorder %s17, 0
      %p75 = por %p73, %p74
      %p76 = scmp.ne.s32.totalorder %s64, %s65
      %p77 = scmp.eq.s32.totalorder %s18, 3
      %p78 = por %p76, %p77
      %p80 = scmp.ne.s32.totalorder %s65, %s79
      %p81 = scmp.eq.s32.totalorder %s18, 0
      %p82 = por %p80, %p81
      %s84 = sadd.s32 %s83, 1
      %p87 = scmp.eq.s32.totalorder %s12, 3
      %p88 = scmp.ne.s32.totalorder %s83, %s85
      %p89 = scmp.eq.s32.totalorder %s12, 0
      %p90 = por %p88, %p89
      %p91 = scmp.ne.s32.totalorder %s83, %s85
      %p92 = scmp.eq.s32.totalorder %s17, 3
      %p93 = por %p91, %p92
      %p94 = scmp.ne.s32.totalorder %s85, %s86
      %p95 = scmp.eq.s32.totalorder %s17, 0
      %p96 = por %p94, %p95
      %p97 = scmp.ne.s32.totalorder %s85, %s86
      %p98 = scmp.eq.s32.totalorder %s18, 3
      %p99 = por %p97, %p98
      %p101 = scmp.ne.s32.totalorder %s86, %s100
      %p102 = scmp.eq.s32.totalorder %s18, 0
      %p103 = por %p101, %p102
      %s104 = ssub.s32 %s19, %s31
      %s105 = ssub.s32 %s20, %s27
      %s106 = sor.u32 %s104, %s105
      %p107 = scmp.eq.s32.totalorder %s106, 0
      %s109 = sadd.s32 %s108, 1
      %s110 = scalar_select %p107, %s108, %s109
      %p113 = pneg %p107
      %p114 = scmp.eq.s32.totalorder %s12, 3
      %p115 = por %p113, %p114
      %p116 = scmp.ne.s32.totalorder %s108, %s111
      %p117 = scmp.eq.s32.totalorder %s12, 0
      %p118 = por %p116, %p117
      %p119 = scmp.ne.s32.totalorder %s108, %s111
      %p120 = scmp.eq.s32.totalorder %s17, 3
      %p121 = por %p119, %p120
      %p122 = scmp.ne.s32.totalorder %s111, %s112
      %p123 = scmp.eq.s32.totalorder %s17, 0
      %p124 = por %p122, %p123
      %p125 = scmp.ne.s32.totalorder %s111, %s112
      %p126 = scmp.eq.s32.totalorder %s18, 3
      %p127 = por %p125, %p126
      %p129 = scmp.ne.s32.totalorder %s112, %s128
      %p130 = scmp.eq.s32.totalorder %s18, 0
      %p131 = por %p129, %p130
      %p132 = scmp.le.s32.totalorder 1, %s12
      %p133 = scmp.lt.s32.totalorder %s12, 5
      %p134 = pnand %p132, %p133
      %p135 = pneg %p134
      // Predicated region
      $region9: #{tpu_custom_call.1} parent=5 // pred_check
        _
      $region10: #{tpu_custom_call.1} parent=5 // pred_check_branch
        %137 = sbr.rel (%p134) target = $region12
      $region11: #{tpu_custom_call.1} parent=5 // pred_region
        %s138 = ssub.s32 %s12, 1
        // Predicated region
        $region13: #{tpu_custom_call.1} parent=11 // pred_check
          %p139 = pneg %p75
        $region14: #{tpu_custom_call.1} parent=11 // pred_check_branch
          %141 = sbr.rel (%p139) target = $region16
        $region15: #{tpu_custom_call.1} parent=11 // pred_region
          _
        $region16: #{tpu_custom_call.1} parent=11 // pred_fallthru
          _
        // Predicated region
        $region17: #{tpu_custom_call.1} parent=11 // pred_check
          %p142 = pneg %p96
        $region18: #{tpu_custom_call.1} parent=11 // pred_check_branch
          %144 = sbr.rel (%p142) target = $region20
        $region19: #{tpu_custom_call.1} parent=11 // pred_region
          _
        $region20: #{tpu_custom_call.1} parent=11 // pred_fallthru
          _
      $region12: #{tpu_custom_call.1} parent=5 // pred_fallthru
        _
      %p145 = scmp.lt.s32.totalorder %s12, 4
      // Predicated region
      $region21: #{tpu_custom_call.1} parent=5 // pred_check
        %p146 = pneg %p145
      $region22: #{tpu_custom_call.1} parent=5 // pred_check_branch
        %148 = sbr.rel (%p146) target = $region24
      $region23: #{tpu_custom_call.1} parent=5 // pred_region
        // Predicated region
        $region25: #{tpu_custom_call.1} parent=23 // pred_check
          %p149 = pneg %p48
        $region26: #{tpu_custom_call.1} parent=23 // pred_check_branch
          %151 = sbr.rel (%p149) target = $region28
        $region27: #{tpu_custom_call.1} parent=23 // pred_region
          %s152 = smul.u32 %s19, 2
          %s153 = sadd.s32 %s152, %s20
          %p154 = scmp.lt.s32.totalorder %s153, 3
          %s155 = scalar_select %p154, %s153, 3
          %s156 = smul.addr %s155, 30
          %s157 = smul.addr %s156, 4
          %s158 = scalar_lea.vmem %s0, %s157
          %s159 = smul.u32 %s19, 2
          %s160 = sadd.s32 %s159, %s20
        $region28: #{tpu_custom_call.1} parent=23 // pred_fallthru
          _
      $region24: #{tpu_custom_call.1} parent=5 // pred_fallthru
        _
      %p161 = scmp.le.s32.totalorder 1, %s12
      %p162 = scmp.lt.s32.totalorder %s12, 5
      %p163 = pnand %p161, %p162
      %p164 = pneg %p163
      // Predicated region
      $region29: #{tpu_custom_call.1} parent=5 // pred_check
        _
      $region30: #{tpu_custom_call.1} parent=5 // pred_check_branch
        %166 = sbr.rel (%p163) target = $region32
      $region31: #{tpu_custom_call.1} parent=5 // pred_region
        %s167 = ssub.s32 %s12, 1
        %s168 = smul.u32 %s21, 2
        %s169 = sadd.s32 %s168, %s22
        %p170 = scmp.lt.s32.totalorder %s169, 3
        %s171 = scalar_select %p170, %s169, 3
        %s172 = smul.addr %s171, 30
        %s173 = smul.addr %s172, 4
        %s174 = scalar_lea.vmem %s0, %s173
        %p175 = pneg %p54
        %p176 = pneg %p51
        %p177 = pneg %p75
        %p178 = pneg %p72
        %p179 = pneg %p96
        %p180 = pneg %p93
        %p181 = pneg %p124
        %p182 = pneg %p121
        %s183 = sand.u32 %s111, 1
        %s184 = scalar_lea.sflag [#allocation3], %s183
        %s185 = sand.u32 %s111, 1
        %s186 = smul.addr %s185, 128
        %s187 = scalar_lea.vmem [#allocation2], %s186
        %s188 = smul.u32 %s21, 2
        %s189 = sadd.s32 %s188, %s22
        %p190 = scmp.lt.s32.totalorder %s189, 3
        %s191 = scalar_select %p190, %s189, 3
        %s192 = smul.addr %s191, 30
        %s193 = smul.addr %s192, 4
        %s194 = scalar_lea.vmem %s0, %s193
        %s195 = smul.u32 %s21, 2
        %s196 = sadd.s32 %s195, %s22
        %s197 = smul.u32 8, %s22
        %v199 = vld [vmem:[%s194] sm:$0xf]
        %v200 = vld [vmem:[%s194 + $0x4] sm:$0xf]
        %v201 = vld [vmem:[%s194 + $0x8] sm:$0x1]
        %v202 = vld [vmem:[%s194 + $0xc] sm:$0xf]
        %v203 = vld [vmem:[%s194 + $0x10] sm:$0xf]
        %v204 = vld [vmem:[%s194 + $0x14] sm:$0x1]
        %v205 = vld [vmem:[%s194 + $0x18] sm:$0xf]
        %v206 = vld [vmem:[%s194 + $0x1c] sm:$0xf]
        %v207 = vld [vmem:[%s194 + $0x20] sm:$0x1]
        %v208 = vld [vmem:[%s194 + $0x24] sm:$0xf]
        %v209 = vld [vmem:[%s194 + $0x28] sm:$0xf]
        %v210 = vld [vmem:[%s194 + $0x2c] sm:$0x1]
        %v211 = vld [vmem:[%s194 + $0x30] sm:$0xf]
        %v212 = vld [vmem:[%s194 + $0x34] sm:$0xf]
        %v213 = vld [vmem:[%s194 + $0x38] sm:$0x1]
        %v214 = vld [vmem:[%s194 + $0x3c] sm:$0xf]
        %v215 = vld [vmem:[%s194 + $0x40] sm:$0xf]
        %v216 = vld [vmem:[%s194 + $0x44] sm:$0x1]
        %v217 = vld [vmem:[%s194 + $0x48] sm:$0xf]
        %v218 = vld [vmem:[%s194 + $0x4c] sm:$0xf]
        %v219 = vld [vmem:[%s194 + $0x50] sm:$0x1]
        %v220 = vld [vmem:[%s194 + $0x54] sm:$0xf]
        %v221 = vld [vmem:[%s194 + $0x58] sm:$0xf]
        %v222 = vld [vmem:[%s194 + $0x5c] sm:$0x1]
        %v223 = vld [vmem:[%s194 + $0x60] sm:$0xf]
        %v224 = vld [vmem:[%s194 + $0x64] sm:$0xf]
        %v225 = vld [vmem:[%s194 + $0x68] sm:$0x1]
        %v226 = vld [vmem:[%s194 + $0x6c] sm:$0xf]
        %v227 = vld [vmem:[%s194 + $0x70] sm:$0xf]
        %v228 = vld [vmem:[%s194 + $0x74] sm:$0x1]
        %v229 = vld [vmem:[%s1] sm:$0x3]
        %vm230 = vsmask.f32 3328
        %vm231 = vsmask.f32 7440
        %vm232 = vmor %vm230, %vm231
        %v234 = vshrl.u32 %v199, 16
        %v236 = vrot.slane %v234, 4
        %v237 = vshll.u32 %v199, 16
        %v239 = vrot.slane %v237, 5
        %v240 = vor.u32 %v236, %v239
        %v241 = vrot.slane %v240, 4
        %v243 = vshll.u32 %v200, 16
        %v245 = vrot.slane %v243, 5
        %v246 = vsel %vm232, %v241, %v245
        %v247 = vshrl.u32 %v200, 16
        %v249 = vrot.slane %v247, 4
        %v250 = vor.u32 %v249, %v245
        %v251 = vrot.slane %v250, 4
        %v253 = vshll.u32 %v201, 16
        %v255 = vrot.slane %v253, 5
        %v256 = vsel %vm232, %v251, %v255
        %v258 = vshrl.u32 %v202, 16
        %v260 = vrot.slane %v258, 4
        %v261 = vshll.u32 %v202, 16
        %v263 = vrot.slane %v261, 5
        %v264 = vor.u32 %v260, %v263
        %v265 = vrot.slane %v264, 4
        %v267 = vshll.u32 %v203, 16
        %v269 = vrot.slane %v267, 5
        %v270 = vsel %vm232, %v265, %v269
        %v271 = vshrl.u32 %v203, 16
        %v273 = vrot.slane %v271, 4
        %v274 = vor.u32 %v273, %v269
        %v275 = vrot.slane %v274, 4
        %v277 = vshll.u32 %v204, 16
        %v279 = vrot.slane %v277, 5
        %v280 = vsel %vm232, %v275, %v279
        %v282 = vshrl.u32 %v205, 16
        %v284 = vrot.slane %v282, 4
        %v285 = vshll.u32 %v205, 16
        %v287 = vrot.slane %v285, 5
        %v288 = vor.u32 %v284, %v287
        %v289 = vrot.slane %v288, 4
        %v291 = vshll.u32 %v206, 16
        %v293 = vrot.slane %v291, 5
        %v294 = vsel %vm232, %v289, %v293
        %v295 = vshrl.u32 %v206, 16
        %v297 = vrot.slane %v295, 4
        %v298 = vor.u32 %v297, %v293
        %v299 = vrot.slane %v298, 4
        %v301 = vshll.u32 %v207, 16
        %v303 = vrot.slane %v301, 5
        %v304 = vsel %vm232, %v299, %v303
        %v306 = vshrl.u32 %v208, 16
        %v308 = vrot.slane %v306, 4
        %v309 = vshll.u32 %v208, 16
        %v311 = vrot.slane %v309, 5
        %v312 = vor.u32 %v308, %v311
        %v313 = vrot.slane %v312, 4
        %v315 = vshll.u32 %v209, 16
        %v317 = vrot.slane %v315, 5
        %v318 = vsel %vm232, %v313, %v317
        %v319 = vshrl.u32 %v209, 16
        %v321 = vrot.slane %v319, 4
        %v322 = vor.u32 %v321, %v317
        %v323 = vrot.slane %v322, 4
        %v325 = vshll.u32 %v210, 16
        %v327 = vrot.slane %v325, 5
        %v328 = vsel %vm232, %v323, %v327
        %v330 = vshrl.u32 %v211, 16
        %v332 = vrot.slane %v330, 4
        %v333 = vshll.u32 %v211, 16
        %v335 = vrot.slane %v333, 5
        %v336 = vor.u32 %v332, %v335
        %v337 = vrot.slane %v336, 4
        %v339 = vshll.u32 %v212, 16
        %v341 = vrot.slane %v339, 5
        %v342 = vsel %vm232, %v337, %v341
        %v343 = vshrl.u32 %v212, 16
        %v345 = vrot.slane %v343, 4
        %v346 = vor.u32 %v345, %v341
        %v347 = vrot.slane %v346, 4
        %v349 = vshll.u32 %v213, 16
        %v351 = vrot.slane %v349, 5
        %v352 = vsel %vm232, %v347, %v351
        %v354 = vshrl.u32 %v214, 16
        %v356 = vrot.slane %v354, 4
        %v357 = vshll.u32 %v214, 16
        %v359 = vrot.slane %v357, 5
        %v360 = vor.u32 %v356, %v359
        %v361 = vrot.slane %v360, 4
        %v363 = vshll.u32 %v215, 16
        %v365 = vrot.slane %v363, 5
        %v366 = vsel %vm232, %v361, %v365
        %v367 = vshrl.u32 %v215, 16
        %v369 = vrot.slane %v367, 4
        %v370 = vor.u32 %v369, %v365
        %v371 = vrot.slane %v370, 4
        %v373 = vshll.u32 %v216, 16
        %v375 = vrot.slane %v373, 5
        %v376 = vsel %vm232, %v371, %v375
        %v378 = vshrl.u32 %v217, 16
        %v380 = vrot.slane %v378, 4
        %v381 = vshll.u32 %v217, 16
        %v383 = vrot.slane %v381, 5
        %v384 = vor.u32 %v380, %v383
        %v385 = vrot.slane %v384, 4
        %v387 = vshll.u32 %v218, 16
        %v389 = vrot.slane %v387, 5
        %v390 = vsel %vm232, %v385, %v389
        %v391 = vshrl.u32 %v218, 16
        %v393 = vrot.slane %v391, 4
        %v394 = vor.u32 %v393, %v389
        %v395 = vrot.slane %v394, 4
        %v397 = vshll.u32 %v219, 16
        %v399 = vrot.slane %v397, 5
        %v400 = vsel %vm232, %v395, %v399
        %v402 = vshrl.u32 %v220, 16
        %v404 = vrot.slane %v402, 4
        %v405 = vshll.u32 %v220, 16
        %v407 = vrot.slane %v405, 5
        %v408 = vor.u32 %v404, %v407
        %v409 = vrot.slane %v408, 4
        %v411 = vshll.u32 %v221, 16
        %v413 = vrot.slane %v411, 5
        %v414 = vsel %vm232, %v409, %v413
        %v415 = vshrl.u32 %v221, 16
        %v417 = vrot.slane %v415, 4
        %v418 = vor.u32 %v417, %v413
        %v419 = vrot.slane %v418, 4
        %v421 = vshll.u32 %v222, 16
        %v423 = vrot.slane %v421, 5
        %v424 = vsel %vm232, %v419, %v423
        %s425 = scalar_lea.vmem %s1, 2
        %v426 = vld [vmem:[%s425] sm:$0x3]
        %v427 = vunpack.c.l.b16 %v246
        %v428 = vunpack.c.l.b16 %v256
        %v429 = vunpack.c.l.b16 %v270
        %v430 = vunpack.c.l.b16 %v280
        %v431 = vunpack.c.l.b16 %v294
        %v432 = vunpack.c.l.b16 %v304
        %v433 = vunpack.c.l.b16 %v318
        %v434 = vunpack.c.l.b16 %v328
        %v435 = vunpack.c.l.b16 %v342
        %v436 = vunpack.c.l.b16 %v352
        %v437 = vunpack.c.l.b16 %v366
        %v438 = vunpack.c.l.b16 %v376
        %v439 = vunpack.c.l.b16 %v390
        %v440 = vunpack.c.l.b16 %v400
        %v441 = vunpack.c.l.b16 %v414
        %v442 = vunpack.c.l.b16 %v424
        %v443 = vpack.c.b16 %v428, %v427
        %v444 = vpack.c.b16 %v430, %v429
        %v445 = vpack.c.b16 %v432, %v431
        %v446 = vpack.c.b16 %v434, %v433
        %v447 = vpack.c.b16 %v436, %v435
        %v448 = vpack.c.b16 %v438, %v437
        %v449 = vpack.c.b16 %v440, %v439
        %v450 = vpack.c.b16 %v442, %v441
        %vm451 = vcmask 31744
        %v453 = vsel %vm451, %v443, 0
        %v456 = vsel %vm451, %v444, 0
        %v459 = vsel %vm451, %v445, 0
        %v462 = vsel %vm451, %v446, 0
        %v465 = vsel %vm451, %v447, 0
        %v468 = vsel %vm451, %v448, 0
        %v471 = vsel %vm451, %v449, 0
        %v474 = vsel %vm451, %v450, 0
        %vm476 = vcmask 1041408
        %v478 = vsel %vm476, %v426, 0
        %480 = vmatpush.bf16.msra.mxu0 0
        %481 = vmatpush.bf16.msra.mxu0 0
        %482 = vmatpush.bf16.msra.mxu0 0
        %483 = vmatpush.bf16.msra.mxu0 0
        %484 = vmatpush.bf16.msra.mxu0 0
        %485 = vmatpush.bf16.msra.mxu0 0
        %486 = vmatpush.bf16.msra.mxu0 0
        %487 = vmatpush.bf16.msra.mxu0 %v478
        %488 = vmatmul.bf16.gmra.mxu0 %v453
        %v489 = vpop.f32.mrf.mxu0
        %v490 = vadd.f32 0.0, %v489
        %v491 = vpop.f32.mrf.mxu0
        %v492 = vadd.f32 0.0, %v491
        %493 = vmatmul.bf16.gmra.mxu0 %v456
        %v494 = vpop.f32.mrf.mxu0
        %v495 = vadd.f32 0.0, %v494
        %v496 = vpop.f32.mrf.mxu0
        %v497 = vadd.f32 0.0, %v496
        %498 = vmatmul.bf16.gmra.mxu0 %v459
        %v499 = vpop.f32.mrf.mxu0
        %v500 = vadd.f32 0.0, %v499
        %v501 = vpop.f32.mrf.mxu0
        %v502 = vadd.f32 0.0, %v501
        %503 = vmatmul.bf16.gmra.mxu0 %v462
        %v504 = vpop.f32.mrf.mxu0
        %v505 = vadd.f32 0.0, %v504
        %v506 = vpop.f32.mrf.mxu0
        %v507 = vadd.f32 0.0, %v506
        %508 = vmatmul.bf16.gmra.mxu0 %v465
        %v509 = vpop.f32.mrf.mxu0
        %v510 = vadd.f32 0.0, %v509
        %v511 = vpop.f32.mrf.mxu0
        %v512 = vadd.f32 0.0, %v511
        %513 = vmatmul.bf16.gmra.mxu0 %v468
        %v514 = vpop.f32.mrf.mxu0
        %v515 = vadd.f32 0.0, %v514
        %v516 = vpop.f32.mrf.mxu0
        %v517 = vadd.f32 0.0, %v516
        %518 = vmatmul.bf16.gmra.mxu0 %v471
        %v519 = vpop.f32.mrf.mxu0
        %v520 = vadd.f32 0.0, %v519
        %v521 = vpop.f32.mrf.mxu0
        %v522 = vadd.f32 0.0, %v521
        %523 = vmatmul.bf16.gmra.mxu0 %v474
        %v524 = vpop.f32.mrf.mxu0
        %v525 = vadd.f32 0.0, %v524
        %v526 = vpop.f32.mrf.mxu0
        %v527 = vadd.f32 0.0, %v526
        %528 = vdwg.mxu0
        %v545 = vunpack.c.l.b16 %v199
        %v546 = vunpack.c.l.b16 %v200
        %v547 = vunpack.c.l.b16 %v202
        %v548 = vunpack.c.l.b16 %v203
        %v549 = vunpack.c.l.b16 %v205
        %v550 = vunpack.c.l.b16 %v206
        %v551 = vunpack.c.l.b16 %v208
        %v552 = vunpack.c.l.b16 %v209
        %v553 = vunpack.c.l.b16 %v211
        %v554 = vunpack.c.l.b16 %v212
        %v555 = vunpack.c.l.b16 %v214
        %v556 = vunpack.c.l.b16 %v215
        %v557 = vunpack.c.l.b16 %v217
        %v558 = vunpack.c.l.b16 %v218
        %v559 = vunpack.c.l.b16 %v220
        %v560 = vunpack.c.l.b16 %v221
        %v561 = vpack.c.b16 %v546, %v545
        %v562 = vpack.c.b16 %v548, %v547
        %v563 = vpack.c.b16 %v550, %v549
        %v564 = vpack.c.b16 %v552, %v551
        %v565 = vpack.c.b16 %v554, %v553
        %v566 = vpack.c.b16 %v556, %v555
        %v567 = vpack.c.b16 %v558, %v557
        %v568 = vpack.c.b16 %v560, %v559
        %v570 = vsel %vm451, %v561, 0
        %v573 = vsel %vm451, %v562, 0
        %v576 = vsel %vm451, %v563, 0
        %v579 = vsel %vm451, %v564, 0
        %v582 = vsel %vm451, %v565, 0
        %v585 = vsel %vm451, %v566, 0
        %v588 = vsel %vm451, %v567, 0
        %v591 = vsel %vm451, %v568, 0
        %v594 = vsel %vm476, %v229, 0
        %596 = vmatpush.bf16.msra.mxu0 0
        %597 = vmatpush.bf16.msra.mxu0 0
        %598 = vmatpush.bf16.msra.mxu0 0
        %599 = vmatpush.bf16.msra.mxu0 0
        %600 = vmatpush.bf16.msra.mxu0 0
        %601 = vmatpush.bf16.msra.mxu0 0
        %602 = vmatpush.bf16.msra.mxu0 0
        %603 = vmatpush.bf16.msra.mxu0 %v594
        %604 = vmatmul.bf16.gmra.mxu0 %v570
        %v605 = vpop.f32.mrf.mxu0
        %v606 = vadd.f32 %v490, %v605
        %v607 = vpop.f32.mrf.mxu0
        %v608 = vadd.f32 %v492, %v607
        %609 = vmatmul.bf16.gmra.mxu0 %v573
        %v610 = vpop.f32.mrf.mxu0
        %v611 = vadd.f32 %v495, %v610
        %v612 = vpop.f32.mrf.mxu0
        %v613 = vadd.f32 %v497, %v612
        %614 = vmatmul.bf16.gmra.mxu0 %v576
        %v615 = vpop.f32.mrf.mxu0
        %v616 = vadd.f32 %v500, %v615
        %v617 = vpop.f32.mrf.mxu0
        %v618 = vadd.f32 %v502, %v617
        %619 = vmatmul.bf16.gmra.mxu0 %v579
        %v620 = vpop.f32.mrf.mxu0
        %v621 = vadd.f32 %v505, %v620
        %v622 = vpop.f32.mrf.mxu0
        %v623 = vadd.f32 %v507, %v622
        %624 = vmatmul.bf16.gmra.mxu0 %v582
        %v625 = vpop.f32.mrf.mxu0
        %v626 = vadd.f32 %v510, %v625
        %v627 = vpop.f32.mrf.mxu0
        %v628 = vadd.f32 %v512, %v627
        %629 = vmatmul.bf16.gmra.mxu0 %v585
        %v630 = vpop.f32.mrf.mxu0
        %v631 = vadd.f32 %v515, %v630
        %v632 = vpop.f32.mrf.mxu0
        %v633 = vadd.f32 %v517, %v632
        %634 = vmatmul.bf16.gmra.mxu0 %v588
        %v635 = vpop.f32.mrf.mxu0
        %v636 = vadd.f32 %v520, %v635
        %v637 = vpop.f32.mrf.mxu0
        %v638 = vadd.f32 %v522, %v637
        %639 = vmatmul.bf16.gmra.mxu0 %v591
        %v640 = vpop.f32.mrf.mxu0
        %v641 = vadd.f32 %v525, %v640
        %v642 = vpop.f32.mrf.mxu0
        %v643 = vadd.f32 %v527, %v642
        %644 = vdwg.mxu0
        %vm653 = vcmask 1042432
        %vm654 = vcmask 1046532
        %vm655 = vmor %vm653, %vm654
        %v656 = vrot.slane %v199, 5
        %v657 = vrot.slane %v656, 4
        %v658 = vrot.slane %v200, 5
        %v659 = vsel %vm655, %v657, %v658
        %v660 = vrot.slane %v658, 4
        %v661 = vrot.slane %v201, 5
        %v662 = vsel %vm655, %v660, %v661
        %v663 = vrot.slane %v202, 5
        %v664 = vrot.slane %v663, 4
        %v665 = vrot.slane %v203, 5
        %v666 = vsel %vm655, %v664, %v665
        %v667 = vrot.slane %v665, 4
        %v668 = vrot.slane %v204, 5
        %v669 = vsel %vm655, %v667, %v668
        %v670 = vrot.slane %v205, 5
        %v671 = vrot.slane %v670, 4
        %v672 = vrot.slane %v206, 5
        %v673 = vsel %vm655, %v671, %v672
        %v674 = vrot.slane %v672, 4
        %v675 = vrot.slane %v207, 5
        %v676 = vsel %vm655, %v674, %v675
        %v677 = vrot.slane %v208, 5
        %v678 = vrot.slane %v677, 4
        %v679 = vrot.slane %v209, 5
        %v680 = vsel %vm655, %v678, %v679
        %v681 = vrot.slane %v679, 4
        %v682 = vrot.slane %v210, 5
        %v683 = vsel %vm655, %v681, %v682
        %v684 = vrot.slane %v211, 5
        %v685 = vrot.slane %v684, 4
        %v686 = vrot.slane %v212, 5
        %v687 = vsel %vm655, %v685, %v686
        %v688 = vrot.slane %v686, 4
        %v689 = vrot.slane %v213, 5
        %v690 = vsel %vm655, %v688, %v689
        %v691 = vrot.slane %v214, 5
        %v692 = vrot.slane %v691, 4
        %v693 = vrot.slane %v215, 5
        %v694 = vsel %vm655, %v692, %v693
        %v695 = vrot.slane %v693, 4
        %v696 = vrot.slane %v216, 5
        %v697 = vsel %vm655, %v695, %v696
        %v698 = vrot.slane %v217, 5
        %v699 = vrot.slane %v698, 4
        %v700 = vrot.slane %v218, 5
        %v701 = vsel %vm655, %v699, %v700
        %v702 = vrot.slane %v700, 4
        %v703 = vrot.slane %v219, 5
        %v704 = vsel %vm655, %v702, %v703
        %v705 = vrot.slane %v220, 5
        %v706 = vrot.slane %v705, 4
        %v707 = vrot.slane %v221, 5
        %v708 = vsel %vm655, %v706, %v707
        %v709 = vrot.slane %v707, 4
        %v710 = vrot.slane %v222, 5
        %v711 = vsel %vm655, %v709, %v710
        %s712 = scalar_lea.vmem %s1, 4
        %v713 = vld [vmem:[%s712] sm:$0x3]
        %v714 = vunpack.c.l.b16 %v659
        %v715 = vunpack.c.l.b16 %v662
        %v716 = vunpack.c.l.b16 %v666
        %v717 = vunpack.c.l.b16 %v669
        %v718 = vunpack.c.l.b16 %v673
        %v719 = vunpack.c.l.b16 %v676
        %v720 = vunpack.c.l.b16 %v680
        %v721 = vunpack.c.l.b16 %v683
        %v722 = vunpack.c.l.b16 %v687
        %v723 = vunpack.c.l.b16 %v690
        %v724 = vunpack.c.l.b16 %v694
        %v725 = vunpack.c.l.b16 %v697
        %v726 = vunpack.c.l.b16 %v701
        %v727 = vunpack.c.l.b16 %v704
        %v728 = vunpack.c.l.b16 %v708
        %v729 = vunpack.c.l.b16 %v711
        %v730 = vpack.c.b16 %v715, %v714
        %v731 = vpack.c.b16 %v717, %v716
        %v732 = vpack.c.b16 %v719, %v718
        %v733 = vpack.c.b16 %v721, %v720
        %v734 = vpack.c.b16 %v723, %v722
        %v735 = vpack.c.b16 %v725, %v724
        %v736 = vpack.c.b16 %v727, %v726
        %v737 = vpack.c.b16 %v729, %v728
        %v739 = vsel %vm451, %v730, 0
        %v742 = vsel %vm451, %v731, 0
        %v745 = vsel %vm451, %v732, 0
        %v748 = vsel %vm451, %v733, 0
        %v751 = vsel %vm451, %v734, 0
        %v754 = vsel %vm451, %v735, 0
        %v757 = vsel %vm451, %v736, 0
        %v760 = vsel %vm451, %v737, 0
        %v763 = vsel %vm476, %v713, 0
        %765 = vmatpush.bf16.msra.mxu0 0
        %766 = vmatpush.bf16.msra.mxu0 0
        %767 = vmatpush.bf16.msra.mxu0 0
        %768 = vmatpush.bf16.msra.mxu0 0
        %769 = vmatpush.bf16.msra.mxu0 0
        %770 = vmatpush.bf16.msra.mxu0 0
        %771 = vmatpush.bf16.msra.mxu0 0
        %772 = vmatpush.bf16.msra.mxu0 %v763
        %773 = vmatmul.bf16.gmra.mxu0 %v739
        %v774 = vpop.f32.mrf.mxu0
        %v775 = vadd.f32 0.0, %v774
        %v776 = vpop.f32.mrf.mxu0
        %v777 = vadd.f32 0.0, %v776
        %778 = vmatmul.bf16.gmra.mxu0 %v742
        %v779 = vpop.f32.mrf.mxu0
        %v780 = vadd.f32 0.0, %v779
        %v781 = vpop.f32.mrf.mxu0
        %v782 = vadd.f32 0.0, %v781
        %783 = vmatmul.bf16.gmra.mxu0 %v745
        %v784 = vpop.f32.mrf.mxu0
        %v785 = vadd.f32 0.0, %v784
        %v786 = vpop.f32.mrf.mxu0
        %v787 = vadd.f32 0.0, %v786
        %788 = vmatmul.bf16.gmra.mxu0 %v748
        %v789 = vpop.f32.mrf.mxu0
        %v790 = vadd.f32 0.0, %v789
        %v791 = vpop.f32.mrf.mxu0
        %v792 = vadd.f32 0.0, %v791
        %793 = vmatmul.bf16.gmra.mxu0 %v751
        %v794 = vpop.f32.mrf.mxu0
        %v795 = vadd.f32 0.0, %v794
        %v796 = vpop.f32.mrf.mxu0
        %v797 = vadd.f32 0.0, %v796
        %798 = vmatmul.bf16.gmra.mxu0 %v754
        %v799 = vpop.f32.mrf.mxu0
        %v800 = vadd.f32 0.0, %v799
        %v801 = vpop.f32.mrf.mxu0
        %v802 = vadd.f32 0.0, %v801
        %803 = vmatmul.bf16.gmra.mxu0 %v757
        %v804 = vpop.f32.mrf.mxu0
        %v805 = vadd.f32 0.0, %v804
        %v806 = vpop.f32.mrf.mxu0
        %v807 = vadd.f32 0.0, %v806
        %808 = vmatmul.bf16.gmra.mxu0 %v760
        %v809 = vpop.f32.mrf.mxu0
        %v810 = vadd.f32 0.0, %v809
        %v811 = vpop.f32.mrf.mxu0
        %v812 = vadd.f32 0.0, %v811
        %813 = vdwg.mxu0
        %v814 = vadd.f32 %v606, %v775
        %v815 = vadd.f32 %v608, %v777
        %v816 = vadd.f32 %v611, %v780
        %v817 = vadd.f32 %v613, %v782
        %v818 = vadd.f32 %v616, %v785
        %v819 = vadd.f32 %v618, %v787
        %v820 = vadd.f32 %v621, %v790
        %v821 = vadd.f32 %v623, %v792
        %v822 = vadd.f32 %v626, %v795
        %v823 = vadd.f32 %v628, %v797
        %v824 = vadd.f32 %v631, %v800
        %v825 = vadd.f32 %v633, %v802
        %v826 = vadd.f32 %v636, %v805
        %v827 = vadd.f32 %v638, %v807
        %v828 = vadd.f32 %v641, %v810
        %v829 = vadd.f32 %v643, %v812
        %s830 = scalar_lea.vmem %s1, 6
        %v831 = vld [vmem:[%s830] sm:$0x3]
        %v834 = vunpack.c.l.b16 %v223
        %v835 = vunpack.c.l.b16 %v224
        %v836 = vpack.c.b16 %v835, %v834
        %v838 = vsel %vm451, %v836, 0
        %v841 = vsel %vm476, %v831, 0
        %843 = vmatpush.bf16.msra.mxu0 0
        %844 = vmatpush.bf16.msra.mxu0 0
        %845 = vmatpush.bf16.msra.mxu0 0
        %846 = vmatpush.bf16.msra.mxu0 0
        %847 = vmatpush.bf16.msra.mxu0 0
        %848 = vmatpush.bf16.msra.mxu0 0
        %849 = vmatpush.bf16.msra.mxu0 0
        %850 = vmatpush.bf16.msra.mxu0 %v841
        %851 = vmatmul.bf16.gmra.mxu0 %v573
        %v852 = vpop.f32.mrf.mxu0
        %v853 = vadd.f32 0.0, %v852
        %v854 = vpop.f32.mrf.mxu0
        %v855 = vadd.f32 0.0, %v854
        %856 = vmatmul.bf16.gmra.mxu0 %v576
        %v857 = vpop.f32.mrf.mxu0
        %v858 = vadd.f32 0.0, %v857
        %v859 = vpop.f32.mrf.mxu0
        %v860 = vadd.f32 0.0, %v859
        %861 = vmatmul.bf16.gmra.mxu0 %v579
        %v862 = vpop.f32.mrf.mxu0
        %v863 = vadd.f32 0.0, %v862
        %v864 = vpop.f32.mrf.mxu0
        %v865 = vadd.f32 0.0, %v864
        %866 = vmatmul.bf16.gmra.mxu0 %v582
        %v867 = vpop.f32.mrf.mxu0
        %v868 = vadd.f32 0.0, %v867
        %v869 = vpop.f32.mrf.mxu0
        %v870 = vadd.f32 0.0, %v869
        %871 = vmatmul.bf16.gmra.mxu0 %v585
        %v872 = vpop.f32.mrf.mxu0
        %v873 = vadd.f32 0.0, %v872
        %v874 = vpop.f32.mrf.mxu0
        %v875 = vadd.f32 0.0, %v874
        %876 = vmatmul.bf16.gmra.mxu0 %v588
        %v877 = vpop.f32.mrf.mxu0
        %v878 = vadd.f32 0.0, %v877
        %v879 = vpop.f32.mrf.mxu0
        %v880 = vadd.f32 0.0, %v879
        %881 = vmatmul.bf16.gmra.mxu0 %v591
        %v882 = vpop.f32.mrf.mxu0
        %v883 = vadd.f32 0.0, %v882
        %v884 = vpop.f32.mrf.mxu0
        %v885 = vadd.f32 0.0, %v884
        %886 = vmatmul.bf16.gmra.mxu0 %v838
        %v887 = vpop.f32.mrf.mxu0
        %v888 = vadd.f32 0.0, %v887
        %v889 = vpop.f32.mrf.mxu0
        %v890 = vadd.f32 0.0, %v889
        %891 = vdwg.mxu0
        %v892 = vadd.f32 %v814, %v853
        %v893 = vadd.f32 %v815, %v855
        %v894 = vadd.f32 %v816, %v858
        %v895 = vadd.f32 %v817, %v860
        %v896 = vadd.f32 %v818, %v863
        %v897 = vadd.f32 %v819, %v865
        %v898 = vadd.f32 %v820, %v868
        %v899 = vadd.f32 %v821, %v870
        %v900 = vadd.f32 %v822, %v873
        %v901 = vadd.f32 %v823, %v875
        %v902 = vadd.f32 %v824, %v878
        %v903 = vadd.f32 %v825, %v880
        %v904 = vadd.f32 %v826, %v883
        %v905 = vadd.f32 %v827, %v885
        %v906 = vadd.f32 %v828, %v888
        %v907 = vadd.f32 %v829, %v890
        %v909 = vshrl.u32 %v223, 16
        %v911 = vrot.slane %v909, 4
        %v912 = vshll.u32 %v223, 16
        %v914 = vrot.slane %v912, 5
        %v915 = vor.u32 %v911, %v914
        %v916 = vrot.slane %v915, 4
        %v918 = vshll.u32 %v224, 16
        %v920 = vrot.slane %v918, 5
        %v921 = vsel %vm232, %v916, %v920
        %v922 = vshrl.u32 %v224, 16
        %v924 = vrot.slane %v922, 4
        %v925 = vor.u32 %v924, %v920
        %v926 = vrot.slane %v925, 4
        %v928 = vshll.u32 %v225, 16
        %v930 = vrot.slane %v928, 5
        %v931 = vsel %vm232, %v926, %v930
        %s932 = scalar_lea.vmem %s1, 8
        %v933 = vld [vmem:[%s932] sm:$0x3]
        %v934 = vunpack.c.l.b16 %v921
        %v935 = vunpack.c.l.b16 %v931
        %v936 = vpack.c.b16 %v935, %v934
        %v938 = vsel %vm451, %v936, 0
        %v941 = vsel %vm476, %v933, 0
        %943 = vmatpush.bf16.msra.mxu0 0
        %944 = vmatpush.bf16.msra.mxu0 0
        %945 = vmatpush.bf16.msra.mxu0 0
        %946 = vmatpush.bf16.msra.mxu0 0
        %947 = vmatpush.bf16.msra.mxu0 0
        %948 = vmatpush.bf16.msra.mxu0 0
        %949 = vmatpush.bf16.msra.mxu0 0
        %950 = vmatpush.bf16.msra.mxu0 %v941
        %951 = vmatmul.bf16.gmra.mxu0 %v456
        %v952 = vpop.f32.mrf.mxu0
        %v953 = vadd.f32 0.0, %v952
        %v954 = vpop.f32.mrf.mxu0
        %v955 = vadd.f32 0.0, %v954
        %956 = vmatmul.bf16.gmra.mxu0 %v459
        %v957 = vpop.f32.mrf.mxu0
        %v958 = vadd.f32 0.0, %v957
        %v959 = vpop.f32.mrf.mxu0
        %v960 = vadd.f32 0.0, %v959
        %961 = vmatmul.bf16.gmra.mxu0 %v462
        %v962 = vpop.f32.mrf.mxu0
        %v963 = vadd.f32 0.0, %v962
        %v964 = vpop.f32.mrf.mxu0
        %v965 = vadd.f32 0.0, %v964
        %966 = vmatmul.bf16.gmra.mxu0 %v465
        %v967 = vpop.f32.mrf.mxu0
        %v968 = vadd.f32 0.0, %v967
        %v969 = vpop.f32.mrf.mxu0
        %v970 = vadd.f32 0.0, %v969
        %971 = vmatmul.bf16.gmra.mxu0 %v468
        %v972 = vpop.f32.mrf.mxu0
        %v973 = vadd.f32 0.0, %v972
        %v974 = vpop.f32.mrf.mxu0
        %v975 = vadd.f32 0.0, %v974
        %976 = vmatmul.bf16.gmra.mxu0 %v471
        %v977 = vpop.f32.mrf.mxu0
        %v978 = vadd.f32 0.0, %v977
        %v979 = vpop.f32.mrf.mxu0
        %v980 = vadd.f32 0.0, %v979
        %981 = vmatmul.bf16.gmra.mxu0 %v474
        %v982 = vpop.f32.mrf.mxu0
        %v983 = vadd.f32 0.0, %v982
        %v984 = vpop.f32.mrf.mxu0
        %v985 = vadd.f32 0.0, %v984
        %986 = vmatmul.bf16.gmra.mxu0 %v938
        %v987 = vpop.f32.mrf.mxu0
        %v988 = vadd.f32 0.0, %v987
        %v989 = vpop.f32.mrf.mxu0
        %v990 = vadd.f32 0.0, %v989
        %991 = vdwg.mxu0
        %v992 = vadd.f32 %v892, %v953
        %v993 = vadd.f32 %v893, %v955
        %v994 = vadd.f32 %v894, %v958
        %v995 = vadd.f32 %v895, %v960
        %v996 = vadd.f32 %v896, %v963
        %v997 = vadd.f32 %v897, %v965
        %v998 = vadd.f32 %v898, %v968
        %v999 = vadd.f32 %v899, %v970
        %v1000 = vadd.f32 %v900, %v973
        %v1001 = vadd.f32 %v901, %v975
        %v1002 = vadd.f32 %v902, %v978
        %v1003 = vadd.f32 %v903, %v980
        %v1004 = vadd.f32 %v904, %v983
        %v1005 = vadd.f32 %v905, %v985
        %v1006 = vadd.f32 %v906, %v988
        %v1007 = vadd.f32 %v907, %v990
        %v1009 = vrot.slane %v223, 5
        %v1010 = vrot.slane %v1009, 4
        %v1011 = vrot.slane %v224, 5
        %v1012 = vsel %vm655, %v1010, %v1011
        %v1013 = vrot.slane %v1011, 4
        %v1014 = vrot.slane %v225, 5
        %v1015 = vsel %vm655, %v1013, %v1014
        %s1016 = scalar_lea.vmem %s1, 10
        %v1017 = vld [vmem:[%s1016] sm:$0x3]
        %v1018 = vunpack.c.l.b16 %v1012
        %v1019 = vunpack.c.l.b16 %v1015
        %v1020 = vpack.c.b16 %v1019, %v1018
        %v1022 = vsel %vm451, %v1020, 0
        %v1025 = vsel %vm476, %v1017, 0
        %1027 = vmatpush.bf16.msra.mxu0 0
        %1028 = vmatpush.bf16.msra.mxu0 0
        %1029 = vmatpush.bf16.msra.mxu0 0
        %1030 = vmatpush.bf16.msra.mxu0 0
        %1031 = vmatpush.bf16.msra.mxu0 0
        %1032 = vmatpush.bf16.msra.mxu0 0
        %1033 = vmatpush.bf16.msra.mxu0 0
        %1034 = vmatpush.bf16.msra.mxu0 %v1025
        %1035 = vmatmul.bf16.gmra.mxu0 %v742
        %v1036 = vpop.f32.mrf.mxu0
        %v1037 = vadd.f32 0.0, %v1036
        %v1038 = vpop.f32.mrf.mxu0
        %v1039 = vadd.f32 0.0, %v1038
        %1040 = vmatmul.bf16.gmra.mxu0 %v745
        %v1041 = vpop.f32.mrf.mxu0
        %v1042 = vadd.f32 0.0, %v1041
        %v1043 = vpop.f32.mrf.mxu0
        %v1044 = vadd.f32 0.0, %v1043
        %1045 = vmatmul.bf16.gmra.mxu0 %v748
        %v1046 = vpop.f32.mrf.mxu0
        %v1047 = vadd.f32 0.0, %v1046
        %v1048 = vpop.f32.mrf.mxu0
        %v1049 = vadd.f32 0.0, %v1048
        %1050 = vmatmul.bf16.gmra.mxu0 %v751
        %v1051 = vpop.f32.mrf.mxu0
        %v1052 = vadd.f32 0.0, %v1051
        %v1053 = vpop.f32.mrf.mxu0
        %v1054 = vadd.f32 0.0, %v1053
        %1055 = vmatmul.bf16.gmra.mxu0 %v754
        %v1056 = vpop.f32.mrf.mxu0
        %v1057 = vadd.f32 0.0, %v1056
        %v1058 = vpop.f32.mrf.mxu0
        %v1059 = vadd.f32 0.0, %v1058
        %1060 = vmatmul.bf16.gmra.mxu0 %v757
        %v1061 = vpop.f32.mrf.mxu0
        %v1062 = vadd.f32 0.0, %v1061
        %v1063 = vpop.f32.mrf.mxu0
        %v1064 = vadd.f32 0.0, %v1063
        %1065 = vmatmul.bf16.gmra.mxu0 %v760
        %v1066 = vpop.f32.mrf.mxu0
        %v1067 = vadd.f32 0.0, %v1066
        %v1068 = vpop.f32.mrf.mxu0
        %v1069 = vadd.f32 0.0, %v1068
        %1070 = vmatmul.bf16.gmra.mxu0 %v1022
        %v1071 = vpop.f32.mrf.mxu0
        %v1072 = vadd.f32 0.0, %v1071
        %v1073 = vpop.f32.mrf.mxu0
        %v1074 = vadd.f32 0.0, %v1073
        %1075 = vdwg.mxu0
        %v1076 = vadd.f32 %v992, %v1037
        %v1077 = vadd.f32 %v993, %v1039
        %v1078 = vadd.f32 %v994, %v1042
        %v1079 = vadd.f32 %v995, %v1044
        %v1080 = vadd.f32 %v996, %v1047
        %v1081 = vadd.f32 %v997, %v1049
        %v1082 = vadd.f32 %v998, %v1052
        %v1083 = vadd.f32 %v999, %v1054
        %v1084 = vadd.f32 %v1000, %v1057
        %v1085 = vadd.f32 %v1001, %v1059
        %v1086 = vadd.f32 %v1002, %v1062
        %v1087 = vadd.f32 %v1003, %v1064
        %v1088 = vadd.f32 %v1004, %v1067
        %v1089 = vadd.f32 %v1005, %v1069
        %v1090 = vadd.f32 %v1006, %v1072
        %v1091 = vadd.f32 %v1007, %v1074
        %s1092 = scalar_lea.vmem %s1, 12
        %v1093 = vld [vmem:[%s1092] sm:$0x3]
        %v1096 = vunpack.c.l.b16 %v226
        %v1097 = vunpack.c.l.b16 %v227
        %v1098 = vpack.c.b16 %v1097, %v1096
        %v1100 = vsel %vm451, %v1098, 0
        %v1103 = vsel %vm476, %v1093, 0
        %1105 = vmatpush.bf16.msra.mxu0 0
        %1106 = vmatpush.bf16.msra.mxu0 0
        %1107 = vmatpush.bf16.msra.mxu0 0
        %1108 = vmatpush.bf16.msra.mxu0 0
        %1109 = vmatpush.bf16.msra.mxu0 0
        %1110 = vmatpush.bf16.msra.mxu0 0
        %1111 = vmatpush.bf16.msra.mxu0 0
        %1112 = vmatpush.bf16.msra.mxu0 %v1103
        %1113 = vmatmul.bf16.gmra.mxu0 %v576
        %v1114 = vpop.f32.mrf.mxu0
        %v1115 = vadd.f32 0.0, %v1114
        %v1116 = vpop.f32.mrf.mxu0
        %v1117 = vadd.f32 0.0, %v1116
        %1118 = vmatmul.bf16.gmra.mxu0 %v579
        %v1119 = vpop.f32.mrf.mxu0
        %v1120 = vadd.f32 0.0, %v1119
        %v1121 = vpop.f32.mrf.mxu0
        %v1122 = vadd.f32 0.0, %v1121
        %1123 = vmatmul.bf16.gmra.mxu0 %v582
        %v1124 = vpop.f32.mrf.mxu0
        %v1125 = vadd.f32 0.0, %v1124
        %v1126 = vpop.f32.mrf.mxu0
        %v1127 = vadd.f32 0.0, %v1126
        %1128 = vmatmul.bf16.gmra.mxu0 %v585
        %v1129 = vpop.f32.mrf.mxu0
        %v1130 = vadd.f32 0.0, %v1129
        %v1131 = vpop.f32.mrf.mxu0
        %v1132 = vadd.f32 0.0, %v1131
        %1133 = vmatmul.bf16.gmra.mxu0 %v588
        %v1134 = vpop.f32.mrf.mxu0
        %v1135 = vadd.f32 0.0, %v1134
        %v1136 = vpop.f32.mrf.mxu0
        %v1137 = vadd.f32 0.0, %v1136
        %1138 = vmatmul.bf16.gmra.mxu0 %v591
        %v1139 = vpop.f32.mrf.mxu0
        %v1140 = vadd.f32 0.0, %v1139
        %v1141 = vpop.f32.mrf.mxu0
        %v1142 = vadd.f32 0.0, %v1141
        %1143 = vmatmul.bf16.gmra.mxu0 %v838
        %v1144 = vpop.f32.mrf.mxu0
        %v1145 = vadd.f32 0.0, %v1144
        %v1146 = vpop.f32.mrf.mxu0
        %v1147 = vadd.f32 0.0, %v1146
        %1148 = vmatmul.bf16.gmra.mxu0 %v1100
        %v1149 = vpop.f32.mrf.mxu0
        %v1150 = vadd.f32 0.0, %v1149
        %v1151 = vpop.f32.mrf.mxu0
        %v1152 = vadd.f32 0.0, %v1151
        %1153 = vdwg.mxu0
        %v1154 = vadd.f32 %v1076, %v1115
        %v1155 = vadd.f32 %v1077, %v1117
        %v1156 = vadd.f32 %v1078, %v1120
        %v1157 = vadd.f32 %v1079, %v1122
        %v1158 = vadd.f32 %v1080, %v1125
        %v1159 = vadd.f32 %v1081, %v1127
        %v1160 = vadd.f32 %v1082, %v1130
        %v1161 = vadd.f32 %v1083, %v1132
        %v1162 = vadd.f32 %v1084, %v1135
        %v1163 = vadd.f32 %v1085, %v1137
        %v1164 = vadd.f32 %v1086, %v1140
        %v1165 = vadd.f32 %v1087, %v1142
        %v1166 = vadd.f32 %v1088, %v1145
        %v1167 = vadd.f32 %v1089, %v1147
        %v1168 = vadd.f32 %v1090, %v1150
        %v1169 = vadd.f32 %v1091, %v1152
        %v1171 = vshrl.u32 %v226, 16
        %v1173 = vrot.slane %v1171, 4
        %v1174 = vshll.u32 %v226, 16
        %v1176 = vrot.slane %v1174, 5
        %v1177 = vor.u32 %v1173, %v1176
        %v1178 = vrot.slane %v1177, 4
        %v1180 = vshll.u32 %v227, 16
        %v1182 = vrot.slane %v1180, 5
        %v1183 = vsel %vm232, %v1178, %v1182
        %v1184 = vshrl.u32 %v227, 16
        %v1186 = vrot.slane %v1184, 4
        %v1187 = vor.u32 %v1186, %v1182
        %v1188 = vrot.slane %v1187, 4
        %v1190 = vshll.u32 %v228, 16
        %v1192 = vrot.slane %v1190, 5
        %v1193 = vsel %vm232, %v1188, %v1192
        %s1194 = scalar_lea.vmem %s1, 14
        %v1195 = vld [vmem:[%s1194] sm:$0x3]
        %v1196 = vunpack.c.l.b16 %v1183
        %v1197 = vunpack.c.l.b16 %v1193
        %v1198 = vpack.c.b16 %v1197, %v1196
        %v1200 = vsel %vm451, %v1198, 0
        %v1203 = vsel %vm476, %v1195, 0
        %1205 = vmatpush.bf16.msra.mxu0 0
        %1206 = vmatpush.bf16.msra.mxu0 0
        %1207 = vmatpush.bf16.msra.mxu0 0
        %1208 = vmatpush.bf16.msra.mxu0 0
        %1209 = vmatpush.bf16.msra.mxu0 0
        %1210 = vmatpush.bf16.msra.mxu0 0
        %1211 = vmatpush.bf16.msra.mxu0 0
        %1212 = vmatpush.bf16.msra.mxu0 %v1203
        %1213 = vmatmul.bf16.gmra.mxu0 %v459
        %v1214 = vpop.f32.mrf.mxu0
        %v1215 = vadd.f32 0.0, %v1214
        %v1216 = vpop.f32.mrf.mxu0
        %v1217 = vadd.f32 0.0, %v1216
        %1218 = vmatmul.bf16.gmra.mxu0 %v462
        %v1219 = vpop.f32.mrf.mxu0
        %v1220 = vadd.f32 0.0, %v1219
        %v1221 = vpop.f32.mrf.mxu0
        %v1222 = vadd.f32 0.0, %v1221
        %1223 = vmatmul.bf16.gmra.mxu0 %v465
        %v1224 = vpop.f32.mrf.mxu0
        %v1225 = vadd.f32 0.0, %v1224
        %v1226 = vpop.f32.mrf.mxu0
        %v1227 = vadd.f32 0.0, %v1226
        %1228 = vmatmul.bf16.gmra.mxu0 %v468
        %v1229 = vpop.f32.mrf.mxu0
        %v1230 = vadd.f32 0.0, %v1229
        %v1231 = vpop.f32.mrf.mxu0
        %v1232 = vadd.f32 0.0, %v1231
        %1233 = vmatmul.bf16.gmra.mxu0 %v471
        %v1234 = vpop.f32.mrf.mxu0
        %v1235 = vadd.f32 0.0, %v1234
        %v1236 = vpop.f32.mrf.mxu0
        %v1237 = vadd.f32 0.0, %v1236
        %1238 = vmatmul.bf16.gmra.mxu0 %v474
        %v1239 = vpop.f32.mrf.mxu0
        %v1240 = vadd.f32 0.0, %v1239
        %v1241 = vpop.f32.mrf.mxu0
        %v1242 = vadd.f32 0.0, %v1241
        %1243 = vmatmul.bf16.gmra.mxu0 %v938
        %v1244 = vpop.f32.mrf.mxu0
        %v1245 = vadd.f32 0.0, %v1244
        %v1246 = vpop.f32.mrf.mxu0
        %v1247 = vadd.f32 0.0, %v1246
        %1248 = vmatmul.bf16.gmra.mxu0 %v1200
        %v1249 = vpop.f32.mrf.mxu0
        %v1250 = vadd.f32 0.0, %v1249
        %v1251 = vpop.f32.mrf.mxu0
        %v1252 = vadd.f32 0.0, %v1251
        %1253 = vdwg.mxu0
        %v1254 = vadd.f32 %v1154, %v1215
        %v1255 = vadd.f32 %v1155, %v1217
        %v1256 = vadd.f32 %v1156, %v1220
        %v1257 = vadd.f32 %v1157, %v1222
        %v1258 = vadd.f32 %v1158, %v1225
        %v1259 = vadd.f32 %v1159, %v1227
        %v1260 = vadd.f32 %v1160, %v1230
        %v1261 = vadd.f32 %v1161, %v1232
        %v1262 = vadd.f32 %v1162, %v1235
        %v1263 = vadd.f32 %v1163, %v1237
        %v1264 = vadd.f32 %v1164, %v1240
        %v1265 = vadd.f32 %v1165, %v1242
        %v1266 = vadd.f32 %v1166, %v1245
        %v1267 = vadd.f32 %v1167, %v1247
        %v1268 = vadd.f32 %v1168, %v1250
        %v1269 = vadd.f32 %v1169, %v1252
        %v1271 = vrot.slane %v226, 5
        %v1272 = vrot.slane %v1271, 4
        %v1273 = vrot.slane %v227, 5
        %v1274 = vsel %vm655, %v1272, %v1273
        %v1275 = vrot.slane %v1273, 4
        %v1276 = vrot.slane %v228, 5
        %v1277 = vsel %vm655, %v1275, %v1276
        %s1278 = scalar_lea.vmem %s1, 16
        %v1279 = vld [vmem:[%s1278] sm:$0x3]
        %v1280 = vunpack.c.l.b16 %v1274
        %v1281 = vunpack.c.l.b16 %v1277
        %v1282 = vpack.c.b16 %v1281, %v1280
        %v1284 = vsel %vm451, %v1282, 0
        %v1287 = vsel %vm476, %v1279, 0
        %1289 = vmatpush.bf16.msra.mxu0 0
        %1290 = vmatpush.bf16.msra.mxu0 0
        %1291 = vmatpush.bf16.msra.mxu0 0
        %1292 = vmatpush.bf16.msra.mxu0 0
        %1293 = vmatpush.bf16.msra.mxu0 0
        %1294 = vmatpush.bf16.msra.mxu0 0
        %1295 = vmatpush.bf16.msra.mxu0 0
        %1296 = vmatpush.bf16.msra.mxu0 %v1287
        %1297 = vmatmul.bf16.gmra.mxu0 %v745
        %v1298 = vpop.f32.mrf.mxu0
        %v1299 = vadd.f32 0.0, %v1298
        %v1300 = vpop.f32.mrf.mxu0
        %v1301 = vadd.f32 0.0, %v1300
        %1302 = vmatmul.bf16.gmra.mxu0 %v748
        %v1303 = vpop.f32.mrf.mxu0
        %v1304 = vadd.f32 0.0, %v1303
        %v1305 = vpop.f32.mrf.mxu0
        %v1306 = vadd.f32 0.0, %v1305
        %1307 = vmatmul.bf16.gmra.mxu0 %v751
        %v1308 = vpop.f32.mrf.mxu0
        %v1309 = vadd.f32 0.0, %v1308
        %v1310 = vpop.f32.mrf.mxu0
        %v1311 = vadd.f32 0.0, %v1310
        %1312 = vmatmul.bf16.gmra.mxu0 %v754
        %v1313 = vpop.f32.mrf.mxu0
        %v1314 = vadd.f32 0.0, %v1313
        %v1315 = vpop.f32.mrf.mxu0
        %v1316 = vadd.f32 0.0, %v1315
        %1317 = vmatmul.bf16.gmra.mxu0 %v757
        %v1318 = vpop.f32.mrf.mxu0
        %v1319 = vadd.f32 0.0, %v1318
        %v1320 = vpop.f32.mrf.mxu0
        %v1321 = vadd.f32 0.0, %v1320
        %1322 = vmatmul.bf16.gmra.mxu0 %v760
        %v1323 = vpop.f32.mrf.mxu0
        %v1324 = vadd.f32 0.0, %v1323
        %v1325 = vpop.f32.mrf.mxu0
        %v1326 = vadd.f32 0.0, %v1325
        %1327 = vmatmul.bf16.gmra.mxu0 %v1022
        %v1328 = vpop.f32.mrf.mxu0
        %v1329 = vadd.f32 0.0, %v1328
        %v1330 = vpop.f32.mrf.mxu0
        %v1331 = vadd.f32 0.0, %v1330
        %1332 = vmatmul.bf16.gmra.mxu0 %v1284
        %v1333 = vpop.f32.mrf.mxu0
        %v1334 = vadd.f32 0.0, %v1333
        %v1335 = vpop.f32.mrf.mxu0
        %v1336 = vadd.f32 0.0, %v1335
        %1337 = vdwg.mxu0
        %v1338 = vadd.f32 %v1254, %v1299
        %v1339 = vadd.f32 %v1255, %v1301
        %v1340 = vadd.f32 %v1256, %v1304
        %v1341 = vadd.f32 %v1257, %v1306
        %v1342 = vadd.f32 %v1258, %v1309
        %v1343 = vadd.f32 %v1259, %v1311
        %v1344 = vadd.f32 %v1260, %v1314
        %v1345 = vadd.f32 %v1261, %v1316
        %v1346 = vadd.f32 %v1262, %v1319
        %v1347 = vadd.f32 %v1263, %v1321
        %v1348 = vadd.f32 %v1264, %v1324
        %v1349 = vadd.f32 %v1265, %v1326
        %v1350 = vadd.f32 %v1266, %v1329
        %v1351 = vadd.f32 %v1267, %v1331
        %v1352 = vadd.f32 %v1268, %v1334
        %v1353 = vadd.f32 %v1269, %v1336
        %v1354 = vld [vmem:[%s2] sm:$0x1]
        %v1356 = vperm.slane %v1354, 0
        %v1358 = vadd.f32 %v1338, %v1356
        %v1359 = vadd.f32 %v1339, %v1356
        %v1360 = vadd.f32 %v1340, %v1356
        %v1361 = vadd.f32 %v1341, %v1356
        %v1362 = vadd.f32 %v1342, %v1356
        %v1363 = vadd.f32 %v1343, %v1356
        %v1364 = vadd.f32 %v1344, %v1356
        %v1365 = vadd.f32 %v1345, %v1356
        %v1366 = vadd.f32 %v1346, %v1356
        %v1367 = vadd.f32 %v1347, %v1356
        %v1368 = vadd.f32 %v1348, %v1356
        %v1369 = vadd.f32 %v1349, %v1356
        %v1370 = vadd.f32 %v1350, %v1356
        %v1371 = vadd.f32 %v1351, %v1356
        %v1372 = vadd.f32 %v1352, %v1356
        %v1373 = vadd.f32 %v1353, %v1356
        %v1374 = vmul.f32 %v1358, 0.5
        %v1375 = vmul.f32 %v1359, 0.5
        %v1376 = vmul.f32 %v1360, 0.5
        %v1377 = vmul.f32 %v1361, 0.5
        %v1378 = vmul.f32 %v1362, 0.5
        %v1379 = vmul.f32 %v1363, 0.5
        %v1380 = vmul.f32 %v1364, 0.5
        %v1381 = vmul.f32 %v1365, 0.5
        %v1382 = vmul.f32 %v1366, 0.5
        %v1383 = vmul.f32 %v1367, 0.5
        %v1384 = vmul.f32 %v1368, 0.5
        %v1385 = vmul.f32 %v1369, 0.5
        %v1386 = vmul.f32 %v1370, 0.5
        %v1387 = vmul.f32 %v1371, 0.5
        %v1388 = vmul.f32 %v1372, 0.5
        %v1389 = vmul.f32 %v1373, 0.5
        %v1390 = vmul.f32 %v1358, 0.70710677
        %v1391 = vmul.f32 %v1359, 0.70710677
        %v1392 = vmul.f32 %v1360, 0.70710677
        %v1393 = vmul.f32 %v1361, 0.70710677
        %v1394 = vmul.f32 %v1362, 0.70710677
        %v1395 = vmul.f32 %v1363, 0.70710677
        %v1396 = vmul.f32 %v1364, 0.70710677
        %v1397 = vmul.f32 %v1365, 0.70710677
        %v1398 = vmul.f32 %v1366, 0.70710677
        %v1399 = vmul.f32 %v1367, 0.70710677
        %v1400 = vmul.f32 %v1368, 0.70710677
        %v1401 = vmul.f32 %v1369, 0.70710677
        %v1402 = vmul.f32 %v1370, 0.70710677
        %v1403 = vmul.f32 %v1371, 0.70710677
        %v1404 = vmul.f32 %v1372, 0.70710677
        %v1405 = vmul.f32 %v1373, 0.70710677
        %v1406 = vmul.f32 %v1390, %v1390
        %v1407 = vmin.f32 16.0, %v1406
        %v1408 = vmul.f32 %v1407, 2.1237322e-06
        %v1409 = vadd.f32 %v1408, 0.00028619796
        %v1410 = vmul.f32 %v1407, %v1409
        %v1411 = vadd.f32 %v1410, 0.0036580483
        %v1412 = vmul.f32 %v1407, %v1411
        %v1413 = vadd.f32 %v1412, 0.05243302
        %v1414 = vmul.f32 %v1407, %v1413
        %v1415 = vadd.f32 %v1414, 0.18741608
        %v1416 = vmul.f32 %v1407, %v1415
        %v1417 = vadd.f32 %v1416, 1.1283791
        %v1418 = vmul.f32 %v1390, %v1417
        %v1419 = vmul.f32 %v1407, 3.8918573e-05
        %v1420 = vadd.f32 %v1419, 0.001143296
        %v1421 = vmul.f32 %v1407, %v1420
        %v1422 = vadd.f32 %v1421, 0.014752088
        %v1423 = vmul.f32 %v1407, %v1422
        %v1424 = vadd.f32 %v1423, 0.112945676
        %v1425 = vmul.f32 %v1407, %v1424
        %v1426 = vadd.f32 %v1425, 0.4994258
        %v1427 = vmul.f32 %v1407, %v1426
        %v1428 = vadd.f32 %v1427, 1.0
        %v1429 = vrcp.pop %v1428
        %v1430 = vmul.f32 %v1428, %v1429
        %v1431 = vsub.f32 1.0, %v1430
        %v1432 = vmul.f32 %v1429, %v1431
        %v1433 = vadd.f32 %v1429, %v1432
        %vm1434 = vweird.f32 %v1428
        %vm1435 = vweird.f32 %v1429
        %vm1436 = vmor %vm1434, %vm1435
        %v1437 = vsel %vm1436, %v1429, %v1433
        %v1438 = vand.u32 2147483647, %v1428
        %vm1439 = vcmp.eq.f32.partialorder %v1438, 8.507059e+37
        %v1440 = vand.u32 %v1428, 2147483648
        %v1441 = vor.u32 1.1754944e-38, %v1440
        %v1442 = vsel %vm1439, %v1441, %v1437
        %v1443 = vmul.f32 %v1418, %v1442
        %v1444 = vmin.f32 %v1443, 1.0
        %v1445 = vmax.f32 %v1444, -1.0
        %v1446 = vmul.f32 %v1391, %v1391
        %v1447 = vmin.f32 16.0, %v1446
        %v1448 = vmul.f32 %v1447, 2.1237322e-06
        %v1449 = vadd.f32 %v1448, 0.00028619796
        %v1450 = vmul.f32 %v1447, %v1449
        %v1451 = vadd.f32 %v1450, 0.0036580483
        %v1452 = vmul.f32 %v1447, %v1451
        %v1453 = vadd.f32 %v1452, 0.05243302
        %v1454 = vmul.f32 %v1447, %v1453
        %v1455 = vadd.f32 %v1454, 0.18741608
        %v1456 = vmul.f32 %v1447, %v1455
        %v1457 = vadd.f32 %v1456, 1.1283791
        %v1458 = vmul.f32 %v1391, %v1457
        %v1459 = vmul.f32 %v1447, 3.8918573e-05
        %v1460 = vadd.f32 %v1459, 0.001143296
        %v1461 = vmul.f32 %v1447, %v1460
        %v1462 = vadd.f32 %v1461, 0.014752088
        %v1463 = vmul.f32 %v1447, %v1462
        %v1464 = vadd.f32 %v1463, 0.112945676
        %v1465 = vmul.f32 %v1447, %v1464
        %v1466 = vadd.f32 %v1465, 0.4994258
        %v1467 = vmul.f32 %v1447, %v1466
        %v1468 = vadd.f32 %v1467, 1.0
        %v1469 = vrcp.pop %v1468
        %v1470 = vmul.f32 %v1468, %v1469
        %v1471 = vsub.f32 1.0, %v1470
        %v1472 = vmul.f32 %v1469, %v1471
        %v1473 = vadd.f32 %v1469, %v1472
        %vm1474 = vweird.f32 %v1468
        %vm1475 = vweird.f32 %v1469
        %vm1476 = vmor %vm1474, %vm1475
        %v1477 = vsel %vm1476, %v1469, %v1473
        %v1478 = vand.u32 2147483647, %v1468
        %vm1479 = vcmp.eq.f32.partialorder %v1478, 8.507059e+37
        %v1480 = vand.u32 %v1468, 2147483648
        %v1481 = vor.u32 1.1754944e-38, %v1480
        %v1482 = vsel %vm1479, %v1481, %v1477
        %v1483 = vmul.f32 %v1458, %v1482
        %v1484 = vmin.f32 %v1483, 1.0
        %v1485 = vmax.f32 %v1484, -1.0
        %v1486 = vmul.f32 %v1392, %v1392
        %v1487 = vmin.f32 16.0, %v1486
        %v1488 = vmul.f32 %v1487, 2.1237322e-06
        %v1489 = vadd.f32 %v1488, 0.00028619796
        %v1490 = vmul.f32 %v1487, %v1489
        %v1491 = vadd.f32 %v1490, 0.0036580483
        %v1492 = vmul.f32 %v1487, %v1491
        %v1493 = vadd.f32 %v1492, 0.05243302
        %v1494 = vmul.f32 %v1487, %v1493
        %v1495 = vadd.f32 %v1494, 0.18741608
        %v1496 = vmul.f32 %v1487, %v1495
        %v1497 = vadd.f32 %v1496, 1.1283791
        %v1498 = vmul.f32 %v1392, %v1497
        %v1499 = vmul.f32 %v1487, 3.8918573e-05
        %v1500 = vadd.f32 %v1499, 0.001143296
        %v1501 = vmul.f32 %v1487, %v1500
        %v1502 = vadd.f32 %v1501, 0.014752088
        %v1503 = vmul.f32 %v1487, %v1502
        %v1504 = vadd.f32 %v1503, 0.112945676
        %v1505 = vmul.f32 %v1487, %v1504
        %v1506 = vadd.f32 %v1505, 0.4994258
        %v1507 = vmul.f32 %v1487, %v1506
        %v1508 = vadd.f32 %v1507, 1.0
        %v1509 = vrcp.pop %v1508
        %v1510 = vmul.f32 %v1508, %v1509
        %v1511 = vsub.f32 1.0, %v1510
        %v1512 = vmul.f32 %v1509, %v1511
        %v1513 = vadd.f32 %v1509, %v1512
        %vm1514 = vweird.f32 %v1508
        %vm1515 = vweird.f32 %v1509
        %vm1516 = vmor %vm1514, %vm1515
        %v1517 = vsel %vm1516, %v1509, %v1513
        %v1518 = vand.u32 2147483647, %v1508
        %vm1519 = vcmp.eq.f32.partialorder %v1518, 8.507059e+37
        %v1520 = vand.u32 %v1508, 2147483648
        %v1521 = vor.u32 1.1754944e-38, %v1520
        %v1522 = vsel %vm1519, %v1521, %v1517
        %v1523 = vmul.f32 %v1498, %v1522
        %v1524 = vmin.f32 %v1523, 1.0
        %v1525 = vmax.f32 %v1524, -1.0
        %v1526 = vmul.f32 %v1393, %v1393
        %v1527 = vmin.f32 16.0, %v1526
        %v1528 = vmul.f32 %v1527, 2.1237322e-06
        %v1529 = vadd.f32 %v1528, 0.00028619796
        %v1530 = vmul.f32 %v1527, %v1529
        %v1531 = vadd.f32 %v1530, 0.0036580483
        %v1532 = vmul.f32 %v1527, %v1531
        %v1533 = vadd.f32 %v1532, 0.05243302
        %v1534 = vmul.f32 %v1527, %v1533
        %v1535 = vadd.f32 %v1534, 0.18741608
        %v1536 = vmul.f32 %v1527, %v1535
        %v1537 = vadd.f32 %v1536, 1.1283791
        %v1538 = vmul.f32 %v1393, %v1537
        %v1539 = vmul.f32 %v1527, 3.8918573e-05
        %v1540 = vadd.f32 %v1539, 0.001143296
        %v1541 = vmul.f32 %v1527, %v1540
        %v1542 = vadd.f32 %v1541, 0.014752088
        %v1543 = vmul.f32 %v1527, %v1542
        %v1544 = vadd.f32 %v1543, 0.112945676
        %v1545 = vmul.f32 %v1527, %v1544
        %v1546 = vadd.f32 %v1545, 0.4994258
        %v1547 = vmul.f32 %v1527, %v1546
        %v1548 = vadd.f32 %v1547, 1.0
        %v1549 = vrcp.pop %v1548
        %v1550 = vmul.f32 %v1548, %v1549
        %v1551 = vsub.f32 1.0, %v1550
        %v1552 = vmul.f32 %v1549, %v1551
        %v1553 = vadd.f32 %v1549, %v1552
        %vm1554 = vweird.f32 %v1548
        %vm1555 = vweird.f32 %v1549
        %vm1556 = vmor %vm1554, %vm1555
        %v1557 = vsel %vm1556, %v1549, %v1553
        %v1558 = vand.u32 2147483647, %v1548
        %vm1559 = vcmp.eq.f32.partialorder %v1558, 8.507059e+37
        %v1560 = vand.u32 %v1548, 2147483648
        %v1561 = vor.u32 1.1754944e-38, %v1560
        %v1562 = vsel %vm1559, %v1561, %v1557
        %v1563 = vmul.f32 %v1538, %v1562
        %v1564 = vmin.f32 %v1563, 1.0
        %v1565 = vmax.f32 %v1564, -1.0
        %v1566 = vmul.f32 %v1394, %v1394
        %v1567 = vmin.f32 16.0, %v1566
        %v1568 = vmul.f32 %v1567, 2.1237322e-06
        %v1569 = vadd.f32 %v1568, 0.00028619796
        %v1570 = vmul.f32 %v1567, %v1569
        %v1571 = vadd.f32 %v1570, 0.0036580483
        %v1572 = vmul.f32 %v1567, %v1571
        %v1573 = vadd.f32 %v1572, 0.05243302
        %v1574 = vmul.f32 %v1567, %v1573
        %v1575 = vadd.f32 %v1574, 0.18741608
        %v1576 = vmul.f32 %v1567, %v1575
        %v1577 = vadd.f32 %v1576, 1.1283791
        %v1578 = vmul.f32 %v1394, %v1577
        %v1579 = vmul.f32 %v1567, 3.8918573e-05
        %v1580 = vadd.f32 %v1579, 0.001143296
        %v1581 = vmul.f32 %v1567, %v1580
        %v1582 = vadd.f32 %v1581, 0.014752088
        %v1583 = vmul.f32 %v1567, %v1582
        %v1584 = vadd.f32 %v1583, 0.112945676
        %v1585 = vmul.f32 %v1567, %v1584
        %v1586 = vadd.f32 %v1585, 0.4994258
        %v1587 = vmul.f32 %v1567, %v1586
        %v1588 = vadd.f32 %v1587, 1.0
        %v1589 = vrcp.pop %v1588
        %v1590 = vmul.f32 %v1588, %v1589
        %v1591 = vsub.f32 1.0, %v1590
        %v1592 = vmul.f32 %v1589, %v1591
        %v1593 = vadd.f32 %v1589, %v1592
        %vm1594 = vweird.f32 %v1588
        %vm1595 = vweird.f32 %v1589
        %vm1596 = vmor %vm1594, %vm1595
        %v1597 = vsel %vm1596, %v1589, %v1593
        %v1598 = vand.u32 2147483647, %v1588
        %vm1599 = vcmp.eq.f32.partialorder %v1598, 8.507059e+37
        %v1600 = vand.u32 %v1588, 2147483648
        %v1601 = vor.u32 1.1754944e-38, %v1600
        %v1602 = vsel %vm1599, %v1601, %v1597
        %v1603 = vmul.f32 %v1578, %v1602
        %v1604 = vmin.f32 %v1603, 1.0
        %v1605 = vmax.f32 %v1604, -1.0
        %v1606 = vmul.f32 %v1395, %v1395
        %v1607 = vmin.f32 16.0, %v1606
        %v1608 = vmul.f32 %v1607, 2.1237322e-06
        %v1609 = vadd.f32 %v1608, 0.00028619796
        %v1610 = vmul.f32 %v1607, %v1609
        %v1611 = vadd.f32 %v1610, 0.0036580483
        %v1612 = vmul.f32 %v1607, %v1611
        %v1613 = vadd.f32 %v1612, 0.05243302
        %v1614 = vmul.f32 %v1607, %v1613
        %v1615 = vadd.f32 %v1614, 0.18741608
        %v1616 = vmul.f32 %v1607, %v1615
        %v1617 = vadd.f32 %v1616, 1.1283791
        %v1618 = vmul.f32 %v1395, %v1617
        %v1619 = vmul.f32 %v1607, 3.8918573e-05
        %v1620 = vadd.f32 %v1619, 0.001143296
        %v1621 = vmul.f32 %v1607, %v1620
        %v1622 = vadd.f32 %v1621, 0.014752088
        %v1623 = vmul.f32 %v1607, %v1622
        %v1624 = vadd.f32 %v1623, 0.112945676
        %v1625 = vmul.f32 %v1607, %v1624
        %v1626 = vadd.f32 %v1625, 0.4994258
        %v1627 = vmul.f32 %v1607, %v1626
        %v1628 = vadd.f32 %v1627, 1.0
        %v1629 = vrcp.pop %v1628
        %v1630 = vmul.f32 %v1628, %v1629
        %v1631 = vsub.f32 1.0, %v1630
        %v1632 = vmul.f32 %v1629, %v1631
        %v1633 = vadd.f32 %v1629, %v1632
        %vm1634 = vweird.f32 %v1628
        %vm1635 = vweird.f32 %v1629
        %vm1636 = vmor %vm1634, %vm1635
        %v1637 = vsel %vm1636, %v1629, %v1633
        %v1638 = vand.u32 2147483647, %v1628
        %vm1639 = vcmp.eq.f32.partialorder %v1638, 8.507059e+37
        %v1640 = vand.u32 %v1628, 2147483648
        %v1641 = vor.u32 1.1754944e-38, %v1640
        %v1642 = vsel %vm1639, %v1641, %v1637
        %v1643 = vmul.f32 %v1618, %v1642
        %v1644 = vmin.f32 %v1643, 1.0
        %v1645 = vmax.f32 %v1644, -1.0
        %v1646 = vmul.f32 %v1396, %v1396
        %v1647 = vmin.f32 16.0, %v1646
        %v1648 = vmul.f32 %v1647, 2.1237322e-06
        %v1649 = vadd.f32 %v1648, 0.00028619796
        %v1650 = vmul.f32 %v1647, %v1649
        %v1651 = vadd.f32 %v1650, 0.0036580483
        %v1652 = vmul.f32 %v1647, %v1651
        %v1653 = vadd.f32 %v1652, 0.05243302
        %v1654 = vmul.f32 %v1647, %v1653
        %v1655 = vadd.f32 %v1654, 0.18741608
        %v1656 = vmul.f32 %v1647, %v1655
        %v1657 = vadd.f32 %v1656, 1.1283791
        %v1658 = vmul.f32 %v1396, %v1657
        %v1659 = vmul.f32 %v1647, 3.8918573e-05
        %v1660 = vadd.f32 %v1659, 0.001143296
        %v1661 = vmul.f32 %v1647, %v1660
        %v1662 = vadd.f32 %v1661, 0.014752088
        %v1663 = vmul.f32 %v1647, %v1662
        %v1664 = vadd.f32 %v1663, 0.112945676
        %v1665 = vmul.f32 %v1647, %v1664
        %v1666 = vadd.f32 %v1665, 0.4994258
        %v1667 = vmul.f32 %v1647, %v1666
        %v1668 = vadd.f32 %v1667, 1.0
        %v1669 = vrcp.pop %v1668
        %v1670 = vmul.f32 %v1668, %v1669
        %v1671 = vsub.f32 1.0, %v1670
        %v1672 = vmul.f32 %v1669, %v1671
        %v1673 = vadd.f32 %v1669, %v1672
        %vm1674 = vweird.f32 %v1668
        %vm1675 = vweird.f32 %v1669
        %vm1676 = vmor %vm1674, %vm1675
        %v1677 = vsel %vm1676, %v1669, %v1673
        %v1678 = vand.u32 2147483647, %v1668
        %vm1679 = vcmp.eq.f32.partialorder %v1678, 8.507059e+37
        %v1680 = vand.u32 %v1668, 2147483648
        %v1681 = vor.u32 1.1754944e-38, %v1680
        %v1682 = vsel %vm1679, %v1681, %v1677
        %v1683 = vmul.f32 %v1658, %v1682
        %v1684 = vmin.f32 %v1683, 1.0
        %v1685 = vmax.f32 %v1684, -1.0
        %v1686 = vmul.f32 %v1397, %v1397
        %v1687 = vmin.f32 16.0, %v1686
        %v1688 = vmul.f32 %v1687, 2.1237322e-06
        %v1689 = vadd.f32 %v1688, 0.00028619796
        %v1690 = vmul.f32 %v1687, %v1689
        %v1691 = vadd.f32 %v1690, 0.0036580483
        %v1692 = vmul.f32 %v1687, %v1691
        %v1693 = vadd.f32 %v1692, 0.05243302
        %v1694 = vmul.f32 %v1687, %v1693
        %v1695 = vadd.f32 %v1694, 0.18741608
        %v1696 = vmul.f32 %v1687, %v1695
        %v1697 = vadd.f32 %v1696, 1.1283791
        %v1698 = vmul.f32 %v1397, %v1697
        %v1699 = vmul.f32 %v1687, 3.8918573e-05
        %v1700 = vadd.f32 %v1699, 0.001143296
        %v1701 = vmul.f32 %v1687, %v1700
        %v1702 = vadd.f32 %v1701, 0.014752088
        %v1703 = vmul.f32 %v1687, %v1702
        %v1704 = vadd.f32 %v1703, 0.112945676
        %v1705 = vmul.f32 %v1687, %v1704
        %v1706 = vadd.f32 %v1705, 0.4994258
        %v1707 = vmul.f32 %v1687, %v1706
        %v1708 = vadd.f32 %v1707, 1.0
        %v1709 = vrcp.pop %v1708
        %v1710 = vmul.f32 %v1708, %v1709
        %v1711 = vsub.f32 1.0, %v1710
        %v1712 = vmul.f32 %v1709, %v1711
        %v1713 = vadd.f32 %v1709, %v1712
        %vm1714 = vweird.f32 %v1708
        %vm1715 = vweird.f32 %v1709
        %vm1716 = vmor %vm1714, %vm1715
        %v1717 = vsel %vm1716, %v1709, %v1713
        %v1718 = vand.u32 2147483647, %v1708
        %vm1719 = vcmp.eq.f32.partialorder %v1718, 8.507059e+37
        %v1720 = vand.u32 %v1708, 2147483648
        %v1721 = vor.u32 1.1754944e-38, %v1720
        %v1722 = vsel %vm1719, %v1721, %v1717
        %v1723 = vmul.f32 %v1698, %v1722
        %v1724 = vmin.f32 %v1723, 1.0
        %v1725 = vmax.f32 %v1724, -1.0
        %v1726 = vmul.f32 %v1398, %v1398
        %v1727 = vmin.f32 16.0, %v1726
        %v1728 = vmul.f32 %v1727, 2.1237322e-06
        %v1729 = vadd.f32 %v1728, 0.00028619796
        %v1730 = vmul.f32 %v1727, %v1729
        %v1731 = vadd.f32 %v1730, 0.0036580483
        %v1732 = vmul.f32 %v1727, %v1731
        %v1733 = vadd.f32 %v1732, 0.05243302
        %v1734 = vmul.f32 %v1727, %v1733
        %v1735 = vadd.f32 %v1734, 0.18741608
        %v1736 = vmul.f32 %v1727, %v1735
        %v1737 = vadd.f32 %v1736, 1.1283791
        %v1738 = vmul.f32 %v1398, %v1737
        %v1739 = vmul.f32 %v1727, 3.8918573e-05
        %v1740 = vadd.f32 %v1739, 0.001143296
        %v1741 = vmul.f32 %v1727, %v1740
        %v1742 = vadd.f32 %v1741, 0.014752088
        %v1743 = vmul.f32 %v1727, %v1742
        %v1744 = vadd.f32 %v1743, 0.112945676
        %v1745 = vmul.f32 %v1727, %v1744
        %v1746 = vadd.f32 %v1745, 0.4994258
        %v1747 = vmul.f32 %v1727, %v1746
        %v1748 = vadd.f32 %v1747, 1.0
        %v1749 = vrcp.pop %v1748
        %v1750 = vmul.f32 %v1748, %v1749
        %v1751 = vsub.f32 1.0, %v1750
        %v1752 = vmul.f32 %v1749, %v1751
        %v1753 = vadd.f32 %v1749, %v1752
        %vm1754 = vweird.f32 %v1748
        %vm1755 = vweird.f32 %v1749
        %vm1756 = vmor %vm1754, %vm1755
        %v1757 = vsel %vm1756, %v1749, %v1753
        %v1758 = vand.u32 2147483647, %v1748
        %vm1759 = vcmp.eq.f32.partialorder %v1758, 8.507059e+37
        %v1760 = vand.u32 %v1748, 2147483648
        %v1761 = vor.u32 1.1754944e-38, %v1760
        %v1762 = vsel %vm1759, %v1761, %v1757
        %v1763 = vmul.f32 %v1738, %v1762
        %v1764 = vmin.f32 %v1763, 1.0
        %v1765 = vmax.f32 %v1764, -1.0
        %v1766 = vmul.f32 %v1399, %v1399
        %v1767 = vmin.f32 16.0, %v1766
        %v1768 = vmul.f32 %v1767, 2.1237322e-06
        %v1769 = vadd.f32 %v1768, 0.00028619796
        %v1770 = vmul.f32 %v1767, %v1769
        %v1771 = vadd.f32 %v1770, 0.0036580483
        %v1772 = vmul.f32 %v1767, %v1771
        %v1773 = vadd.f32 %v1772, 0.05243302
        %v1774 = vmul.f32 %v1767, %v1773
        %v1775 = vadd.f32 %v1774, 0.18741608
        %v1776 = vmul.f32 %v1767, %v1775
        %v1777 = vadd.f32 %v1776, 1.1283791
        %v1778 = vmul.f32 %v1399, %v1777
        %v1779 = vmul.f32 %v1767, 3.8918573e-05
        %v1780 = vadd.f32 %v1779, 0.001143296
        %v1781 = vmul.f32 %v1767, %v1780
        %v1782 = vadd.f32 %v1781, 0.014752088
        %v1783 = vmul.f32 %v1767, %v1782
        %v1784 = vadd.f32 %v1783, 0.112945676
        %v1785 = vmul.f32 %v1767, %v1784
        %v1786 = vadd.f32 %v1785, 0.4994258
        %v1787 = vmul.f32 %v1767, %v1786
        %v1788 = vadd.f32 %v1787, 1.0
        %v1789 = vrcp.pop %v1788
        %v1790 = vmul.f32 %v1788, %v1789
        %v1791 = vsub.f32 1.0, %v1790
        %v1792 = vmul.f32 %v1789, %v1791
        %v1793 = vadd.f32 %v1789, %v1792
        %vm1794 = vweird.f32 %v1788
        %vm1795 = vweird.f32 %v1789
        %vm1796 = vmor %vm1794, %vm1795
        %v1797 = vsel %vm1796, %v1789, %v1793
        %v1798 = vand.u32 2147483647, %v1788
        %vm1799 = vcmp.eq.f32.partialorder %v1798, 8.507059e+37
        %v1800 = vand.u32 %v1788, 2147483648
        %v1801 = vor.u32 1.1754944e-38, %v1800
        %v1802 = vsel %vm1799, %v1801, %v1797
        %v1803 = vmul.f32 %v1778, %v1802
        %v1804 = vmin.f32 %v1803, 1.0
        %v1805 = vmax.f32 %v1804, -1.0
        %v1806 = vmul.f32 %v1400, %v1400
        %v1807 = vmin.f32 16.0, %v1806
        %v1808 = vmul.f32 %v1807, 2.1237322e-06
        %v1809 = vadd.f32 %v1808, 0.00028619796
        %v1810 = vmul.f32 %v1807, %v1809
        %v1811 = vadd.f32 %v1810, 0.0036580483
        %v1812 = vmul.f32 %v1807, %v1811
        %v1813 = vadd.f32 %v1812, 0.05243302
        %v1814 = vmul.f32 %v1807, %v1813
        %v1815 = vadd.f32 %v1814, 0.18741608
        %v1816 = vmul.f32 %v1807, %v1815
        %v1817 = vadd.f32 %v1816, 1.1283791
        %v1818 = vmul.f32 %v1400, %v1817
        %v1819 = vmul.f32 %v1807, 3.8918573e-05
        %v1820 = vadd.f32 %v1819, 0.001143296
        %v1821 = vmul.f32 %v1807, %v1820
        %v1822 = vadd.f32 %v1821, 0.014752088
        %v1823 = vmul.f32 %v1807, %v1822
        %v1824 = vadd.f32 %v1823, 0.112945676
        %v1825 = vmul.f32 %v1807, %v1824
        %v1826 = vadd.f32 %v1825, 0.4994258
        %v1827 = vmul.f32 %v1807, %v1826
        %v1828 = vadd.f32 %v1827, 1.0
        %v1829 = vrcp.pop %v1828
        %v1830 = vmul.f32 %v1828, %v1829
        %v1831 = vsub.f32 1.0, %v1830
        %v1832 = vmul.f32 %v1829, %v1831
        %v1833 = vadd.f32 %v1829, %v1832
        %vm1834 = vweird.f32 %v1828
        %vm1835 = vweird.f32 %v1829
        %vm1836 = vmor %vm1834, %vm1835
        %v1837 = vsel %vm1836, %v1829, %v1833
        %v1838 = vand.u32 2147483647, %v1828
        %vm1839 = vcmp.eq.f32.partialorder %v1838, 8.507059e+37
        %v1840 = vand.u32 %v1828, 2147483648
        %v1841 = vor.u32 1.1754944e-38, %v1840
        %v1842 = vsel %vm1839, %v1841, %v1837
        %v1843 = vmul.f32 %v1818, %v1842
        %v1844 = vmin.f32 %v1843, 1.0
        %v1845 = vmax.f32 %v1844, -1.0
        %v1846 = vmul.f32 %v1401, %v1401
        %v1847 = vmin.f32 16.0, %v1846
        %v1848 = vmul.f32 %v1847, 2.1237322e-06
        %v1849 = vadd.f32 %v1848, 0.00028619796
        %v1850 = vmul.f32 %v1847, %v1849
        %v1851 = vadd.f32 %v1850, 0.0036580483
        %v1852 = vmul.f32 %v1847, %v1851
        %v1853 = vadd.f32 %v1852, 0.05243302
        %v1854 = vmul.f32 %v1847, %v1853
        %v1855 = vadd.f32 %v1854, 0.18741608
        %v1856 = vmul.f32 %v1847, %v1855
        %v1857 = vadd.f32 %v1856, 1.1283791
        %v1858 = vmul.f32 %v1401, %v1857
        %v1859 = vmul.f32 %v1847, 3.8918573e-05
        %v1860 = vadd.f32 %v1859, 0.001143296
        %v1861 = vmul.f32 %v1847, %v1860
        %v1862 = vadd.f32 %v1861, 0.014752088
        %v1863 = vmul.f32 %v1847, %v1862
        %v1864 = vadd.f32 %v1863, 0.112945676
        %v1865 = vmul.f32 %v1847, %v1864
        %v1866 = vadd.f32 %v1865, 0.4994258
        %v1867 = vmul.f32 %v1847, %v1866
        %v1868 = vadd.f32 %v1867, 1.0
        %v1869 = vrcp.pop %v1868
        %v1870 = vmul.f32 %v1868, %v1869
        %v1871 = vsub.f32 1.0, %v1870
        %v1872 = vmul.f32 %v1869, %v1871
        %v1873 = vadd.f32 %v1869, %v1872
        %vm1874 = vweird.f32 %v1868
        %vm1875 = vweird.f32 %v1869
        %vm1876 = vmor %vm1874, %vm1875
        %v1877 = vsel %vm1876, %v1869, %v1873
        %v1878 = vand.u32 2147483647, %v1868
        %vm1879 = vcmp.eq.f32.partialorder %v1878, 8.507059e+37
        %v1880 = vand.u32 %v1868, 2147483648
        %v1881 = vor.u32 1.1754944e-38, %v1880
        %v1882 = vsel %vm1879, %v1881, %v1877
        %v1883 = vmul.f32 %v1858, %v1882
        %v1884 = vmin.f32 %v1883, 1.0
        %v1885 = vmax.f32 %v1884, -1.0
        %v1886 = vmul.f32 %v1402, %v1402
        %v1887 = vmin.f32 16.0, %v1886
        %v1888 = vmul.f32 %v1887, 2.1237322e-06
        %v1889 = vadd.f32 %v1888, 0.00028619796
        %v1890 = vmul.f32 %v1887, %v1889
        %v1891 = vadd.f32 %v1890, 0.0036580483
        %v1892 = vmul.f32 %v1887, %v1891
        %v1893 = vadd.f32 %v1892, 0.05243302
        %v1894 = vmul.f32 %v1887, %v1893
        %v1895 = vadd.f32 %v1894, 0.18741608
        %v1896 = vmul.f32 %v1887, %v1895
        %v1897 = vadd.f32 %v1896, 1.1283791
        %v1898 = vmul.f32 %v1402, %v1897
        %v1899 = vmul.f32 %v1887, 3.8918573e-05
        %v1900 = vadd.f32 %v1899, 0.001143296
        %v1901 = vmul.f32 %v1887, %v1900
        %v1902 = vadd.f32 %v1901, 0.014752088
        %v1903 = vmul.f32 %v1887, %v1902
        %v1904 = vadd.f32 %v1903, 0.112945676
        %v1905 = vmul.f32 %v1887, %v1904
        %v1906 = vadd.f32 %v1905, 0.4994258
        %v1907 = vmul.f32 %v1887, %v1906
        %v1908 = vadd.f32 %v1907, 1.0
        %v1909 = vrcp.pop %v1908
        %v1910 = vmul.f32 %v1908, %v1909
        %v1911 = vsub.f32 1.0, %v1910
        %v1912 = vmul.f32 %v1909, %v1911
        %v1913 = vadd.f32 %v1909, %v1912
        %vm1914 = vweird.f32 %v1908
        %vm1915 = vweird.f32 %v1909
        %vm1916 = vmor %vm1914, %vm1915
        %v1917 = vsel %vm1916, %v1909, %v1913
        %v1918 = vand.u32 2147483647, %v1908
        %vm1919 = vcmp.eq.f32.partialorder %v1918, 8.507059e+37
        %v1920 = vand.u32 %v1908, 2147483648
        %v1921 = vor.u32 1.1754944e-38, %v1920
        %v1922 = vsel %vm1919, %v1921, %v1917
        %v1923 = vmul.f32 %v1898, %v1922
        %v1924 = vmin.f32 %v1923, 1.0
        %v1925 = vmax.f32 %v1924, -1.0
        %v1926 = vmul.f32 %v1403, %v1403
        %v1927 = vmin.f32 16.0, %v1926
        %v1928 = vmul.f32 %v1927, 2.1237322e-06
        %v1929 = vadd.f32 %v1928, 0.00028619796
        %v1930 = vmul.f32 %v1927, %v1929
        %v1931 = vadd.f32 %v1930, 0.0036580483
        %v1932 = vmul.f32 %v1927, %v1931
        %v1933 = vadd.f32 %v1932, 0.05243302
        %v1934 = vmul.f32 %v1927, %v1933
        %v1935 = vadd.f32 %v1934, 0.18741608
        %v1936 = vmul.f32 %v1927, %v1935
        %v1937 = vadd.f32 %v1936, 1.1283791
        %v1938 = vmul.f32 %v1403, %v1937
        %v1939 = vmul.f32 %v1927, 3.8918573e-05
        %v1940 = vadd.f32 %v1939, 0.001143296
        %v1941 = vmul.f32 %v1927, %v1940
        %v1942 = vadd.f32 %v1941, 0.014752088
        %v1943 = vmul.f32 %v1927, %v1942
        %v1944 = vadd.f32 %v1943, 0.112945676
        %v1945 = vmul.f32 %v1927, %v1944
        %v1946 = vadd.f32 %v1945, 0.4994258
        %v1947 = vmul.f32 %v1927, %v1946
        %v1948 = vadd.f32 %v1947, 1.0
        %v1949 = vrcp.pop %v1948
        %v1950 = vmul.f32 %v1948, %v1949
        %v1951 = vsub.f32 1.0, %v1950
        %v1952 = vmul.f32 %v1949, %v1951
        %v1953 = vadd.f32 %v1949, %v1952
        %vm1954 = vweird.f32 %v1948
        %vm1955 = vweird.f32 %v1949
        %vm1956 = vmor %vm1954, %vm1955
        %v1957 = vsel %vm1956, %v1949, %v1953
        %v1958 = vand.u32 2147483647, %v1948
        %vm1959 = vcmp.eq.f32.partialorder %v1958, 8.507059e+37
        %v1960 = vand.u32 %v1948, 2147483648
        %v1961 = vor.u32 1.1754944e-38, %v1960
        %v1962 = vsel %vm1959, %v1961, %v1957
        %v1963 = vmul.f32 %v1938, %v1962
        %v1964 = vmin.f32 %v1963, 1.0
        %v1965 = vmax.f32 %v1964, -1.0
        %v1966 = vmul.f32 %v1404, %v1404
        %v1967 = vmin.f32 16.0, %v1966
        %v1968 = vmul.f32 %v1967, 2.1237322e-06
        %v1969 = vadd.f32 %v1968, 0.00028619796
        %v1970 = vmul.f32 %v1967, %v1969
        %v1971 = vadd.f32 %v1970, 0.0036580483
        %v1972 = vmul.f32 %v1967, %v1971
        %v1973 = vadd.f32 %v1972, 0.05243302
        %v1974 = vmul.f32 %v1967, %v1973
        %v1975 = vadd.f32 %v1974, 0.18741608
        %v1976 = vmul.f32 %v1967, %v1975
        %v1977 = vadd.f32 %v1976, 1.1283791
        %v1978 = vmul.f32 %v1404, %v1977
        %v1979 = vmul.f32 %v1967, 3.8918573e-05
        %v1980 = vadd.f32 %v1979, 0.001143296
        %v1981 = vmul.f32 %v1967, %v1980
        %v1982 = vadd.f32 %v1981, 0.014752088
        %v1983 = vmul.f32 %v1967, %v1982
        %v1984 = vadd.f32 %v1983, 0.112945676
        %v1985 = vmul.f32 %v1967, %v1984
        %v1986 = vadd.f32 %v1985, 0.4994258
        %v1987 = vmul.f32 %v1967, %v1986
        %v1988 = vadd.f32 %v1987, 1.0
        %v1989 = vrcp.pop %v1988
        %v1990 = vmul.f32 %v1988, %v1989
        %v1991 = vsub.f32 1.0, %v1990
        %v1992 = vmul.f32 %v1989, %v1991
        %v1993 = vadd.f32 %v1989, %v1992
        %vm1994 = vweird.f32 %v1988
        %vm1995 = vweird.f32 %v1989
        %vm1996 = vmor %vm1994, %vm1995
        %v1997 = vsel %vm1996, %v1989, %v1993
        %v1998 = vand.u32 2147483647, %v1988
        %vm1999 = vcmp.eq.f32.partialorder %v1998, 8.507059e+37
        %v2000 = vand.u32 %v1988, 2147483648
        %v2001 = vor.u32 1.1754944e-38, %v2000
        %v2002 = vsel %vm1999, %v2001, %v1997
        %v2003 = vmul.f32 %v1978, %v2002
        %v2004 = vmin.f32 %v2003, 1.0
        %v2005 = vmax.f32 %v2004, -1.0
        %v2006 = vmul.f32 %v1405, %v1405
        %v2007 = vmin.f32 16.0, %v2006
        %v2008 = vmul.f32 %v2007, 2.1237322e-06
        %v2009 = vadd.f32 %v2008, 0.00028619796
        %v2010 = vmul.f32 %v2007, %v2009
        %v2011 = vadd.f32 %v2010, 0.0036580483
        %v2012 = vmul.f32 %v2007, %v2011
        %v2013 = vadd.f32 %v2012, 0.05243302
        %v2014 = vmul.f32 %v2007, %v2013
        %v2015 = vadd.f32 %v2014, 0.18741608
        %v2016 = vmul.f32 %v2007, %v2015
        %v2017 = vadd.f32 %v2016, 1.1283791
        %v2018 = vmul.f32 %v1405, %v2017
        %v2019 = vmul.f32 %v2007, 3.8918573e-05
        %v2020 = vadd.f32 %v2019, 0.001143296
        %v2021 = vmul.f32 %v2007, %v2020
        %v2022 = vadd.f32 %v2021, 0.014752088
        %v2023 = vmul.f32 %v2007, %v2022
        %v2024 = vadd.f32 %v2023, 0.112945676
        %v2025 = vmul.f32 %v2007, %v2024
        %v2026 = vadd.f32 %v2025, 0.4994258
        %v2027 = vmul.f32 %v2007, %v2026
        %v2028 = vadd.f32 %v2027, 1.0
        %v2029 = vrcp.pop %v2028
        %v2030 = vmul.f32 %v2028, %v2029
        %v2031 = vsub.f32 1.0, %v2030
        %v2032 = vmul.f32 %v2029, %v2031
        %v2033 = vadd.f32 %v2029, %v2032
        %vm2034 = vweird.f32 %v2028
        %vm2035 = vweird.f32 %v2029
        %vm2036 = vmor %vm2034, %vm2035
        %v2037 = vsel %vm2036, %v2029, %v2033
        %v2038 = vand.u32 2147483647, %v2028
        %vm2039 = vcmp.eq.f32.partialorder %v2038, 8.507059e+37
        %v2040 = vand.u32 %v2028, 2147483648
        %v2041 = vor.u32 1.1754944e-38, %v2040
        %v2042 = vsel %vm2039, %v2041, %v2037
        %v2043 = vmul.f32 %v2018, %v2042
        %v2044 = vmin.f32 %v2043, 1.0
        %v2045 = vmax.f32 %v2044, -1.0
        %v2046 = vadd.f32 %v1445, 1.0
        %v2047 = vadd.f32 %v1485, 1.0
        %v2048 = vadd.f32 %v1525, 1.0
        %v2049 = vadd.f32 %v1565, 1.0
        %v2050 = vadd.f32 %v1605, 1.0
        %v2051 = vadd.f32 %v1645, 1.0
        %v2052 = vadd.f32 %v1685, 1.0
        %v2053 = vadd.f32 %v1725, 1.0
        %v2054 = vadd.f32 %v1765, 1.0
        %v2055 = vadd.f32 %v1805, 1.0
        %v2056 = vadd.f32 %v1845, 1.0
        %v2057 = vadd.f32 %v1885, 1.0
        %v2058 = vadd.f32 %v1925, 1.0
        %v2059 = vadd.f32 %v1965, 1.0
        %v2060 = vadd.f32 %v2005, 1.0
        %v2061 = vadd.f32 %v2045, 1.0
        %v2062 = vmul.f32 %v1374, %v2046
        %v2063 = vmul.f32 %v1375, %v2047
        %v2064 = vmul.f32 %v1376, %v2048
        %v2065 = vmul.f32 %v1377, %v2049
        %v2066 = vmul.f32 %v1378, %v2050
        %v2067 = vmul.f32 %v1379, %v2051
        %v2068 = vmul.f32 %v1380, %v2052
        %v2069 = vmul.f32 %v1381, %v2053
        %v2070 = vmul.f32 %v1382, %v2054
        %v2071 = vmul.f32 %v1383, %v2055
        %v2072 = vmul.f32 %v1384, %v2056
        %v2073 = vmul.f32 %v1385, %v2057
        %v2074 = vmul.f32 %v1386, %v2058
        %v2075 = vmul.f32 %v1387, %v2059
        %v2076 = vmul.f32 %v1388, %v2060
        %v2077 = vmul.f32 %v1389, %v2061
        %2078 = vst [vmem:[%s187] sm:$0xff] %v2062
        %2079 = vst [vmem:[%s187 + $0x8] sm:$0xff] %v2063
        %2080 = vst [vmem:[%s187 + $0x10] sm:$0xff] %v2064
        %2081 = vst [vmem:[%s187 + $0x18] sm:$0xff] %v2065
        %2082 = vst [vmem:[%s187 + $0x20] sm:$0xff] %v2066
        %2083 = vst [vmem:[%s187 + $0x28] sm:$0xff] %v2067
        %2084 = vst [vmem:[%s187 + $0x30] sm:$0xff] %v2068
        %2085 = vst [vmem:[%s187 + $0x38] sm:$0xff] %v2069
        %2086 = vst [vmem:[%s187 + $0x40] sm:$0xff] %v2070
        %2087 = vst [vmem:[%s187 + $0x48] sm:$0xff] %v2071
        %2088 = vst [vmem:[%s187 + $0x50] sm:$0xff] %v2072
        %2089 = vst [vmem:[%s187 + $0x58] sm:$0xff] %v2073
        %2090 = vst [vmem:[%s187 + $0x60] sm:$0xff] %v2074
        %2091 = vst [vmem:[%s187 + $0x68] sm:$0xff] %v2075
        %2092 = vst [vmem:[%s187 + $0x70] sm:$0xff] %v2076
        %2093 = vst [vmem:[%s187 + $0x78] sm:$0xff] %v2077
        %s2094 = sand.u32 %s111, 1
        %s2095 = scalar_lea.sflag [#allocation3], %s2094
        %s2096 = sand.u32 %s111, 1
        %s2097 = smul.addr %s2096, 128
        %s2098 = scalar_lea.vmem [#allocation2], %s2097
        // Predicated region
        $region33: #{tpu_custom_call.1} parent=31 // pred_check
          %p2099 = pneg %p121
        $region34: #{tpu_custom_call.1} parent=31 // pred_check_branch
          %2101 = sbr.rel (%p2099) target = $region36
        $region35: #{tpu_custom_call.1} parent=31 // pred_region
          %s2102 = smul.u32 8, %s22
          %2104 = vsyncadd %s2095, 0
          %s2105 = smul.addr %s2102, 2
          %s2106 = smul.addr %s21, 32
          %s2107 = sadd.s32 %s2105, %s2106
          %s2108 = smul.addr %s2107, 8
          %s2109 = scalar_lea.hbm %s3, %s2108
          %s2110 = sshll.u32 %s2098, 4
          %s2111 = int_to_ptr.vmem [resolvable:$true] %s2110
          %s2112 = sshll.u32 %s2109, 4
          %s2113 = int_to_ptr.hbm [resolvable:$true] %s2112
          %2118 = dma.vmem_to_hbm [thread:$0]  %s2111, 2048, %s2113, %s2095, 128, 128, 8
        $region36: #{tpu_custom_call.1} parent=31 // pred_fallthru
          _
      $region32: #{tpu_custom_call.1} parent=5 // pred_fallthru
        _
      %p2119 = scmp.le.s32.totalorder 2, %s12
      // Predicated region
      $region37: #{tpu_custom_call.1} parent=5 // pred_check
        %p2120 = pneg %p2119
      $region38: #{tpu_custom_call.1} parent=5 // pred_check_branch
        %2122 = sbr.rel (%p2120) target = $region40
      $region39: #{tpu_custom_call.1} parent=5 // pred_region
        %s2123 = ssub.s32 %s12, 2
        // Predicated region
        $region41: #{tpu_custom_call.1} parent=39 // pred_check
          %p2124 = pneg %p127
        $region42: #{tpu_custom_call.1} parent=39 // pred_check_branch
          %2126 = sbr.rel (%p2124) target = $region44
        $region43: #{tpu_custom_call.1} parent=39 // pred_region
          %s2127 = sand.u32 %s112, 1
          %s2128 = scalar_lea.sflag [#allocation3], %s2127
          %s2129 = sand.u32 %s112, 1
          %s2130 = smul.addr %s2129, 128
          %s2131 = scalar_lea.vmem [#allocation2], %s2130
          %2133 = dma.done %s2128, 2048
        $region44: #{tpu_custom_call.1} parent=39 // pred_fallthru
          _
      $region40: #{tpu_custom_call.1} parent=5 // pred_fallthru
        _
    $region6: #{tpu_custom_call.1} parent=1 // loop_footer
      %s16 = sadd.s32 1, %s12
    $region7: #{tpu_custom_call.1} parent=1 // loop_footer_branch
      %11 = sbr.rel target = $region3
    $region8: #{tpu_custom_call.1} parent=1 // loop_exit
      _
    %2134 = vsyncpa [#allocation3], 1
    %s2135 = scalar_lea.sflag [#allocation3], 1
    %2136 = vsyncpa %s2135, 1

</llo_original>
